<compile_context>
chip_gen: v7x
topology: tpu7x:2x2x1
jax: 0.10.0
libtpu: 0.0.40
codegen_flags: <defaults>
</compile_context>

<pallas_src>
import jax
import jax.numpy as jnp
from jax import lax
from jax.experimental import pallas as pl
from jax.experimental.pallas import tpu as pltpu

HIDDEN = 768
PATCH = 16
C_IN = 3
IMG = 224
N_PATCH_SIDE = IMG // PATCH        # 14
N_PATCHES = N_PATCH_SIDE ** 2      # 196
K_IN = C_IN * PATCH * PATCH        # 768


def _pick_tile():
    """Output-channel tile size: one grid step per TensorCore.

    v7x has 2 TCs/chip -> TN=384, grid=(2,), dimension_semantics=("parallel",)
    gives exactly one tile per core.  Single-TC chips (v5e/v6e) do the whole
    (768x768)x(768x196) matmul in one grid step (TN=768).  Unrecognised chips
    default to the megacore-safe 384 (on a single TC that only costs one extra
    ~0.35us grid step).
    """
    try:
        kind = jax.devices()[0].device_kind.lower()
    except Exception:
        kind = ""
    single_tc = any(t in kind for t in ("v5e", "v5 lite", "v6e", "v6 lite"))
    return HIDDEN if single_tc else HIDDEN // 2


TN = _pick_tile()


def _embed_kernel(w_ref, b_ref, p_ref, conv_ref, cls_ref):
    # w_ref:    (TN, K_IN)        f32  weight tile, rows = c_out, cols = (c,kh,kw)
    # b_ref:    (TN, 1)           f32  bias tile
    # p_ref:    (K_IN, N_PATCHES) f32  im2col patches, K-major
    # conv_ref: (TN, N_PATCHES)   f32  channel-major conv output tile
    # cls_ref:  (TN, 1)           f32  cls-token tile (AvgPool2d(14) of conv)
    w = w_ref[...].astype(jnp.bfloat16)      # on-chip casts: bf16 MXU operands,
    p = p_ref[...].astype(jnp.bfloat16)      # fp32 accumulation on the MXU.
    b = b_ref[...]
    acc = jnp.dot(w, p, preferred_element_type=jnp.float32)      # (TN, 196) f32
    conv_ref[...] = (acc + b).astype(conv_ref.dtype)
    # mean over the 196 patches of (acc + b) == mean(acc) + b : fp32 cross-lane
    # row-sum rides the XLU slot (free next to MXU/stores), no second matmul,
    # no bf16-rounded mean column.
    cls = jnp.sum(acc, axis=1, keepdims=True) * (1.0 / N_PATCHES) + b
    cls_ref[...] = cls.astype(cls_ref.dtype)


@jax.jit
def vit_embeddings(x, weight, bias):
    """x: [1,3,224,224] NCHW; weight: [768,3,16,16] OIHW; bias: [768]."""
    assert x.shape == (1, C_IN, IMG, IMG), x.shape

    # im2col for the stride==kernel conv: (c_in*kh*kw, n_patches), K ordered to
    # match Conv2d's OIHW weight flattening.
    # TODO(synk): the patch rearrangement stays in XLA; doing it inside the
    # kernel would require lane-crossing XLU relayouts (16/224/196 not lane
    # aligned) and was judged not worth the cost.
    pk = x.reshape(1, C_IN, N_PATCH_SIDE, PATCH, N_PATCH_SIDE, PATCH)
    pk = pk.transpose(0, 1, 3, 5, 2, 4)                 # (b, c, kh, kw, ph, pw)
    pk = pk.reshape(K_IN, N_PATCHES)                    # (768, 196) f32

    w2 = weight.reshape(HIDDEN, K_IN)                   # free reshape, no .T
    b2 = bias.reshape(HIDDEN, 1)

    conv, cls = pl.pallas_call(
        _embed_kernel,
        out_shape=(
            jax.ShapeDtypeStruct((HIDDEN, N_PATCHES), jnp.float32),  # channel-major
            jax.ShapeDtypeStruct((HIDDEN, 1), jnp.float32),
        ),
        grid_spec=pltpu.PrefetchScalarGridSpec(
            num_scalar_prefetch=0,
            grid=(HIDDEN // TN,),
            in_specs=[
                pl.BlockSpec((TN, K_IN), lambda j: (j, 0)),
                pl.BlockSpec((TN, 1), lambda j: (j, 0)),
                pl.BlockSpec((K_IN, N_PATCHES), lambda j: (0, 0)),
            ],
            out_specs=(
                pl.BlockSpec((TN, N_PATCHES), lambda j: (j, 0)),
                pl.BlockSpec((TN, 1), lambda j: (j, 0)),
            ),
        ),
        compiler_params=pltpu.CompilerParams(
            dimension_semantics=("parallel",)),
    )(w2, b2, pk)

    # conv is channel-major (768, 196), bit-identical to torch's contiguous
    # (1,768,196); the module really does `.flatten(2).reshape((1,196,768))`
    # (a reshape, NOT a transpose), so the row-major reshape below reproduces
    # it exactly.
    # TODO(synk): the reshape+concat remain in XLA — emitting the final flat
    # (197*768,) buffer from the kernel would need an in-kernel relayout of the
    # (TN,196) tile across lane boundaries (196 % 128 != 0), which costs more
    # than the single XLA pass it would replace.
    body = conv.reshape(1, N_PATCHES, HIDDEN)
    cls_tok = cls.reshape(1, 1, HIDDEN)
    out = jnp.concatenate((cls_tok, body), axis=1)      # (1, 197, 768)
    # Dropout(p=0.0) is identity.
    return out


def _reference(x, weight, bias):
    """Pure-JAX fp32 reference replicating the PyTorch forward exactly."""
    out = lax.conv_general_dilated(
        x, weight, window_strides=(PATCH, PATCH), padding="VALID",
        dimension_numbers=("NCHW", "OIHW", "NCHW"),
        precision=lax.Precision.HIGHEST)
    out = out + bias.reshape(1, HIDDEN, 1, 1)                # (1,768,14,14)
    cls = jnp.mean(out, axis=(2, 3)).reshape(1, 1, HIDDEN)   # AvgPool2d(14)
    out = out.reshape(1, HIDDEN, N_PATCHES)                  # flatten(start_dim=2)
    out = out.reshape(1, N_PATCHES, HIDDEN)                  # torch reshape
    return jnp.concatenate((cls, out), axis=1)


if __name__ == "__main__":
    key = jax.random.PRNGKey(0)
    kx, kw, kb = jax.random.split(key, 3)
    # Shapes implied by the module: 224x224x3 input, 16x16 patches, hidden 768.
    x = jax.random.normal(kx, (1, C_IN, IMG, IMG), dtype=jnp.float32)
    weight = 0.02 * jax.random.normal(kw, (HIDDEN, C_IN, PATCH, PATCH),
                                      dtype=jnp.float32)
    bias = 0.02 * jax.random.normal(kb, (HIDDEN,), dtype=jnp.float32)

    out = jax.block_until_ready(vit_embeddings(x, weight, bias))
    ref = jax.block_until_ready(_reference(x, weight, bias))

    assert out.shape == (1, 197, HIDDEN), out.shape
    # bf16 MXU operands with fp32 accumulation and an fp32 cls path: observed
    # error ~1e-3, so 1e-2 (tightened from 5e-2) is a safe bound that no longer
    # hides real bugs at these ~0.5-magnitude activations.
    max_err = float(jnp.max(jnp.abs(out - ref)))
    assert jnp.allclose(out, ref, atol=1e-2, rtol=1e-2), max_err
    print("KERNEL_OK")
</pallas_src>

<mosaic_0001>
module attributes {stable_mosaic.version = 11 : i64} {
  func.func @_embed_kernel(%arg0: i32, %arg1: memref<384x768xf32, #tpu.memory_space<vmem>>, %arg2: memref<384x1xf32, #tpu.memory_space<vmem>>, %arg3: memref<768x196xf32, #tpu.memory_space<vmem>>, %arg4: memref<384x196xf32, #tpu.memory_space<vmem>>, %arg5: memref<384x1xf32, #tpu.memory_space<vmem>>) attributes {dimension_semantics = [#tpu.dimension_semantics<parallel>], iteration_bounds = array<i64: 2>, scalar_prefetch = 0 : i64, scratch_operands = 0 : i64, tpu.core_type = #tpu.core_type<tc>, window_params = [{transform_indices = @transform_0, window_bounds = array<i64: 384, 768>}, {transform_indices = @transform_1, window_bounds = array<i64: 384, 1>}, {pipeline_mode = #tpu.pipeline_mode<synchronous>, transform_indices = @transform_2, window_bounds = array<i64: 768, 196>}, {transform_indices = @transform_3, window_bounds = array<i64: 384, 196>}, {transform_indices = @transform_4, window_bounds = array<i64: 384, 1>}]} {
    %c0 = arith.constant 0 : index
    %c0_0 = arith.constant 0 : index
    %0 = vector.load %arg1[%c0, %c0_0] : memref<384x768xf32, #tpu.memory_space<vmem>>, vector<384x768xf32>
    %1 = arith.truncf %0 : vector<384x768xf32> to vector<384x768xbf16>
    %c0_1 = arith.constant 0 : index
    %c0_2 = arith.constant 0 : index
    %2 = vector.load %arg3[%c0_1, %c0_2] : memref<768x196xf32, #tpu.memory_space<vmem>>, vector<768x196xf32>
    %3 = arith.truncf %2 : vector<768x196xf32> to vector<768x196xbf16>
    %c0_3 = arith.constant 0 : index
    %c0_4 = arith.constant 0 : index
    %4 = vector.load %arg2[%c0_3, %c0_4] : memref<384x1xf32, #tpu.memory_space<vmem>>, vector<384x1xf32>
    %cst = arith.constant dense<0.000000e+00> : vector<384x196xf32>
    %5 = tpu.matmul %1, %3, %cst {dimension_numbers = #tpu.dot_dimension_numbers<[1], [0], [0], [1], [0, 0, 1, 1], [], []>} : vector<384x768xbf16>, vector<768x196xbf16>, vector<384x196xf32> -> vector<384x196xf32>
    %6 = vector.broadcast %4 : vector<384x1xf32> to vector<384x196xf32>
    %7 = arith.addf %5, %6 : vector<384x196xf32>
    %c0_5 = arith.constant 0 : index
    %c0_6 = arith.constant 0 : index
    %8 = vector.load %arg4[%c0_5, %c0_6] : memref<384x196xf32, #tpu.memory_space<vmem>>, vector<384x196xf32>
    tpu.vector_store %arg4[%c0_5, %c0_6], %7 {strides = array<i32>} : memref<384x196xf32, #tpu.memory_space<vmem>>, vector<384x196xf32>,
    %cst_7 = arith.constant dense<0.000000e+00> : vector<384xf32>
    %9 = vector.multi_reduction <add>, %5, %cst_7 [1] : vector<384x196xf32> to vector<384xf32>
    %10 = vector.shape_cast %9 : vector<384xf32> to vector<384x1xf32>
    %cst_8 = arith.constant 0.00510204071 : f32
    %11 = vector.broadcast %cst_8 : f32 to vector<384x1xf32>
    %12 = arith.mulf %10, %11 : vector<384x1xf32>
    %13 = arith.addf %12, %4 : vector<384x1xf32>
    %c0_9 = arith.constant 0 : index
    %c0_10 = arith.constant 0 : index
    %14 = vector.load %arg5[%c0_9, %c0_10] : memref<384x1xf32, #tpu.memory_space<vmem>>, vector<384x1xf32>
    tpu.vector_store %arg5[%c0_9, %c0_10], %13 {strides = array<i32>} : memref<384x1xf32, #tpu.memory_space<vmem>>, vector<384x1xf32>,
    return
  }
  func.func @transform_0(%arg0: i32) -> (i32, i32) {
    %c0_i32 = arith.constant 0 : i32
    %c0_i32_0 = arith.constant 0 : i32
    return %arg0, %c0_i32 : i32, i32
  }
  func.func @transform_1(%arg0: i32) -> (i32, i32) {
    %c0_i32 = arith.constant 0 : i32
    %c0_i32_0 = arith.constant 0 : i32
    return %arg0, %c0_i32 : i32, i32
  }
  func.func @transform_2(%arg0: i32) -> (i32, i32) {
    %c0_i32 = arith.constant 0 : i32
    %c0_i32_0 = arith.constant 0 : i32
    %c0_i32_1 = arith.constant 0 : i32
    return %c0_i32, %c0_i32_0 : i32, i32
  }
  func.func @transform_3(%arg0: i32) -> (i32, i32) {
    %c0_i32 = arith.constant 0 : i32
    %c0_i32_0 = arith.constant 0 : i32
    return %arg0, %c0_i32 : i32, i32
  }
  func.func @transform_4(%arg0: i32) -> (i32, i32) {
    %c0_i32 = arith.constant 0 : i32
    %c0_i32_0 = arith.constant 0 : i32
    return %arg0, %c0_i32 : i32, i32
  }
}

</mosaic_0001>

<llo_original>
// kernel: vit_embeddings.1
$region0: #{vit_embeddings.1}
  #allocation0 [shape = 'u32[]', space=smem, size = 0x4, offset = 0x4, fixed_abs, tag = 'smem constant byte address 0x4 - core index']
  #allocation1 [shape = 'u32[144,128]{1,0:T(1,128)}', space=vmem, size = 0x12000, scoped, tag = 'internal scratch']
  %s0 = inlined_call_operand.vmem [shape: f32[768,768], index: 0, kind: input, shape index: {}]
  %s1 = inlined_call_operand.vmem [shape: f32[768,1], index: 1, kind: input, shape index: {}]
  %s2 = inlined_call_operand.vmem [shape: f32[768,196], index: 2, kind: input, shape index: {}]
  %s3 = inlined_call_operand.vmem [shape: f32[768,196], index: 3, kind: output, shape index: {0}]
  %s4 = inlined_call_operand.vmem [shape: f32[768,1], index: 4, kind: output, shape index: {1}]
  %5 = xla_tuple %s3, %s4
  %s6 = sld [smem:[#allocation0]]
  $region53: #{vit_embeddings.1} parent=0
    _
  %s8 = ssub.s32 1, %s6
  %s9 = scalar_select 0, %s8, %s6
  loop: start=0, step=1, limit=4
  $region2: #{vit_embeddings.1} parent=0 // loop_pre_header
    _
  $region3: #{vit_embeddings.1} parent=0 // loop_header
    %s11 = sphi 0, %s15
    %p12 = scmp.ge.s32.totalorder %s11, 4
    %s21 = sphi 0, %s23
    %s24 = sphi 0, %s21
    %s25 = sphi 0, %s24
    %s41 = sphi 0, %s25
    %s47 = sphi 0, %s49
    %s50 = sphi 0, %s47
    %s51 = sphi 0, %s50
    %s67 = sphi 0, %s51
    %s71 = sphi 0, %s71
    %s73 = sphi 0, %s71
    %s74 = sphi 0, %s73
    %s88 = sphi 0, %s74
    %s94 = sphi 0, %s96
    %s97 = sphi 0, %s94
    %s98 = sphi 0, %s97
    %s114 = sphi 0, %s98
    %s120 = sphi 0, %s122
    %s123 = sphi 0, %s120
    %s124 = sphi 0, %s123
    %s140 = sphi 0, %s124
  $region4: #{vit_embeddings.1} parent=0 // loop_header_branch
    %14 = sbr.rel (%p12) target = $region8
  $region5: #{vit_embeddings.1} parent=0 // loop_body
    %s16 = ssub.s32 %s11, 1
    %s17 = ssub.s32 %s11, 2
    %s18 = sadd.s32 %s11, 1
    %s19 = ssub.s32 %s11, %s18
    %p20 = scmp.eq.s32.totalorder %s19, 0
    %s22 = sadd.s32 %s21, 1
    %s23 = scalar_select %p20, %s21, %s22
    %p26 = pneg %p20
    %p27 = scmp.eq.s32.totalorder %s11, 1
    %p28 = por %p26, %p27
    %p29 = scmp.ne.s32.totalorder %s21, %s24
    %p30 = scmp.eq.s32.totalorder %s11, 0
    %p31 = por %p29, %p30
    %p32 = scmp.ne.s32.totalorder %s21, %s24
    %p33 = scmp.eq.s32.totalorder %s16, 1
    %p34 = por %p32, %p33
    %p35 = scmp.ne.s32.totalorder %s24, %s25
    %p36 = scmp.eq.s32.totalorder %s16, 0
    %p37 = por %p35, %p36
    %p38 = scmp.ne.s32.totalorder %s24, %s25
    %p39 = scmp.eq.s32.totalorder %s17, 1
    %p40 = por %p38, %p39
    %p42 = scmp.ne.s32.totalorder %s25, %s41
    %p43 = scmp.eq.s32.totalorder %s17, 0
    %p44 = por %p42, %p43
    %s45 = ssub.s32 %s11, %s18
    %p46 = scmp.eq.s32.totalorder %s45, 0
    %s48 = sadd.s32 %s47, 1
    %s49 = scalar_select %p46, %s47, %s48
    %p52 = pneg %p46
    %p53 = scmp.eq.s32.totalorder %s11, 1
    %p54 = por %p52, %p53
    %p55 = scmp.ne.s32.totalorder %s47, %s50
    %p56 = scmp.eq.s32.totalorder %s11, 0
    %p57 = por %p55, %p56
    %p58 = scmp.ne.s32.totalorder %s47, %s50
    %p59 = scmp.eq.s32.totalorder %s16, 1
    %p60 = por %p58, %p59
    %p61 = scmp.ne.s32.totalorder %s50, %s51
    %p62 = scmp.eq.s32.totalorder %s16, 0
    %p63 = por %p61, %p62
    %p64 = scmp.ne.s32.totalorder %s50, %s51
    %p65 = scmp.eq.s32.totalorder %s17, 1
    %p66 = por %p64, %p65
    %p68 = scmp.ne.s32.totalorder %s51, %s67
    %p69 = scmp.eq.s32.totalorder %s17, 0
    %p70 = por %p68, %p69
    %s72 = sadd.s32 %s71, 1
    %p75 = scmp.eq.s32.totalorder %s11, 1
    %p76 = scmp.ne.s32.totalorder %s71, %s73
    %p77 = scmp.eq.s32.totalorder %s11, 0
    %p78 = por %p76, %p77
    %p79 = scmp.ne.s32.totalorder %s71, %s73
    %p80 = scmp.eq.s32.totalorder %s16, 1
    %p81 = por %p79, %p80
    %p82 = scmp.ne.s32.totalorder %s73, %s74
    %p83 = scmp.eq.s32.totalorder %s16, 0
    %p84 = por %p82, %p83
    %p85 = scmp.ne.s32.totalorder %s73, %s74
    %p86 = scmp.eq.s32.totalorder %s17, 1
    %p87 = por %p85, %p86
    %p89 = scmp.ne.s32.totalorder %s74, %s88
    %p90 = scmp.eq.s32.totalorder %s17, 0
    %p91 = por %p89, %p90
    %s92 = ssub.s32 %s11, %s18
    %p93 = scmp.eq.s32.totalorder %s92, 0
    %s95 = sadd.s32 %s94, 1
    %s96 = scalar_select %p93, %s94, %s95
    %p99 = pneg %p93
    %p100 = scmp.eq.s32.totalorder %s11, 1
    %p101 = por %p99, %p100
    %p102 = scmp.ne.s32.totalorder %s94, %s97
    %p103 = scmp.eq.s32.totalorder %s11, 0
    %p104 = por %p102, %p103
    %p105 = scmp.ne.s32.totalorder %s94, %s97
    %p106 = scmp.eq.s32.totalorder %s16, 1
    %p107 = por %p105, %p106
    %p108 = scmp.ne.s32.totalorder %s97, %s98
    %p109 = scmp.eq.s32.totalorder %s16, 0
    %p110 = por %p108, %p109
    %p111 = scmp.ne.s32.totalorder %s97, %s98
    %p112 = scmp.eq.s32.totalorder %s17, 1
    %p113 = por %p111, %p112
    %p115 = scmp.ne.s32.totalorder %s98, %s114
    %p116 = scmp.eq.s32.totalorder %s17, 0
    %p117 = por %p115, %p116
    %s118 = ssub.s32 %s11, %s18
    %p119 = scmp.eq.s32.totalorder %s118, 0
    %s121 = sadd.s32 %s120, 1
    %s122 = scalar_select %p119, %s120, %s121
    %p125 = pneg %p119
    %p126 = scmp.eq.s32.totalorder %s11, 1
    %p127 = por %p125, %p126
    %p128 = scmp.ne.s32.totalorder %s120, %s123
    %p129 = scmp.eq.s32.totalorder %s11, 0
    %p130 = por %p128, %p129
    %p131 = scmp.ne.s32.totalorder %s120, %s123
    %p132 = scmp.eq.s32.totalorder %s16, 1
    %p133 = por %p131, %p132
    %p134 = scmp.ne.s32.totalorder %s123, %s124
    %p135 = scmp.eq.s32.totalorder %s16, 0
    %p136 = por %p134, %p135
    %p137 = scmp.ne.s32.totalorder %s123, %s124
    %p138 = scmp.eq.s32.totalorder %s17, 1
    %p139 = por %p137, %p138
    %p141 = scmp.ne.s32.totalorder %s124, %s140
    %p142 = scmp.eq.s32.totalorder %s17, 0
    %p143 = por %p141, %p142
    %p144 = scmp.le.s32.totalorder 1, %s11
    %p145 = scmp.lt.s32.totalorder %s11, 3
    %p146 = pnand %p144, %p145
    %p147 = pneg %p146
    // Predicated region
    $region9: #{vit_embeddings.1} parent=5 // pred_check
      _
    $region10: #{vit_embeddings.1} parent=5 // pred_check_branch
      %149 = sbr.rel (%p146) target = $region12
    $region11: #{vit_embeddings.1} parent=5 // pred_region
      %s150 = ssub.s32 %s11, 1
      // Predicated region
      $region13: #{vit_embeddings.1} parent=11 // pred_check
        %p151 = pneg %p84
      $region14: #{vit_embeddings.1} parent=11 // pred_check_branch
        %153 = sbr.rel (%p151) target = $region16
      $region15: #{vit_embeddings.1} parent=11 // pred_region
        _
      $region16: #{vit_embeddings.1} parent=11 // pred_fallthru
        _
    $region12: #{vit_embeddings.1} parent=5 // pred_fallthru
      _
    %p154 = scmp.lt.s32.totalorder %s11, 2
    // Predicated region
    $region17: #{vit_embeddings.1} parent=5 // pred_check
      %p155 = pneg %p154
    $region18: #{vit_embeddings.1} parent=5 // pred_check_branch
      %157 = sbr.rel (%p155) target = $region20
    $region19: #{vit_embeddings.1} parent=5 // pred_region
      // Predicated region
      $region21: #{vit_embeddings.1} parent=19 // pred_check
        %p158 = pneg %p31
      $region22: #{vit_embeddings.1} parent=19 // pred_check_branch
        %160 = sbr.rel (%p158) target = $region24
      $region23: #{vit_embeddings.1} parent=19 // pred_region
        %s161 = smul.u32 48, %s11
        %p162 = scmp.lt.s32.totalorder %s161, 95
        %s163 = scalar_select %p162, %s161, 95
        %s164 = smul.addr %s163, 6
        %s165 = smul.addr %s164, 8
        %s166 = scalar_lea.vmem %s0, %s165
        %s167 = smul.u32 48, %s11
      $region24: #{vit_embeddings.1} parent=19 // pred_fallthru
        _
      // Predicated region
      $region25: #{vit_embeddings.1} parent=19 // pred_check
        %p168 = pneg %p57
      $region26: #{vit_embeddings.1} parent=19 // pred_check_branch
        %170 = sbr.rel (%p168) target = $region28
      $region27: #{vit_embeddings.1} parent=19 // pred_region
        %s171 = smul.u32 48, %s11
        %p172 = scmp.lt.s32.totalorder %s171, 95
        %s173 = scalar_select %p172, %s171, 95
        %s174 = smul.addr %s173, 8
        %s175 = scalar_lea.vmem %s1, %s174
        %s176 = smul.u32 48, %s11
      $region28: #{vit_embeddings.1} parent=19 // pred_fallthru
        _
    $region20: #{vit_embeddings.1} parent=5 // pred_fallthru
      _
    %p177 = scmp.le.s32.totalorder 1, %s11
    %p178 = scmp.lt.s32.totalorder %s11, 3
    %p179 = pnand %p177, %p178
    %p180 = pneg %p179
    // Predicated region
    $region29: #{vit_embeddings.1} parent=5 // pred_check
      _
    $region30: #{vit_embeddings.1} parent=5 // pred_check_branch
      %182 = sbr.rel (%p179) target = $region32
    $region31: #{vit_embeddings.1} parent=5 // pred_region
      %s183 = ssub.s32 %s11, 1
      %s184 = smul.u32 48, %s16
      %p185 = scmp.lt.s32.totalorder %s184, 95
      %s186 = scalar_select %p185, %s184, 95
      %s187 = smul.addr %s186, 6
      %s188 = smul.addr %s187, 8
      %s189 = scalar_lea.vmem %s0, %s188
      %p190 = pneg %p37
      %p191 = pneg %p34
      %s192 = smul.u32 48, %s16
      %p193 = scmp.lt.s32.totalorder %s192, 95
      %s194 = scalar_select %p193, %s192, 95
      %s195 = smul.addr %s194, 8
      %s196 = scalar_lea.vmem %s1, %s195
      %p197 = pneg %p63
      %p198 = pneg %p60
      %p199 = pneg %p84
      %p200 = pneg %p81
      %p201 = pneg %p110
      %p202 = pneg %p107
      %s203 = smul.u32 48, %s16
      %p204 = scmp.lt.s32.totalorder %s203, 95
      %s205 = scalar_select %p204, %s203, 95
      %s206 = smul.addr %s205, 2
      %s207 = smul.addr %s206, 8
      %s208 = scalar_lea.vmem %s3, %s207
      %p209 = pneg %p136
      %p210 = pneg %p133
      %s211 = smul.u32 48, %s16
      %p212 = scmp.lt.s32.totalorder %s211, 95
      %s213 = scalar_select %p212, %s211, 95
      %s214 = smul.addr %s213, 8
      %s215 = scalar_lea.vmem %s4, %s214
      %s216 = smul.u32 48, %s16
      %p217 = scmp.lt.s32.totalorder %s216, 95
      %s218 = scalar_select %p217, %s216, 95
      %s219 = smul.addr %s218, 6
      %s220 = smul.addr %s219, 8
      %s221 = scalar_lea.vmem %s0, %s220
      %s222 = smul.u32 48, %s16
      %s223 = smul.u32 48, %s16
      %p224 = scmp.lt.s32.totalorder %s223, 95
      %s225 = scalar_select %p224, %s223, 95
      %s226 = smul.addr %s225, 8
      %s227 = scalar_lea.vmem %s1, %s226
      %s228 = smul.u32 48, %s16
      %s229 = smul.u32 48, %s16
      %p230 = scmp.lt.s32.totalorder %s229, 95
      %s231 = scalar_select %p230, %s229, 95
      %s232 = smul.addr %s231, 2
      %s233 = smul.addr %s232, 8
      %s234 = scalar_lea.vmem %s3, %s233
      %s235 = smul.u32 48, %s16
      %s236 = smul.u32 48, %s16
      %p237 = scmp.lt.s32.totalorder %s236, 95
      %s238 = scalar_select %p237, %s236, 95
      %s239 = smul.addr %s238, 8
      %s240 = scalar_lea.vmem %s4, %s239
      %s241 = smul.u32 48, %s16
      %v242 = vld [vmem:[%s221] sm:$0xff]
      %v243 = vld [vmem:[%s221 + $0x8] sm:$0xff]
      %v244 = vld [vmem:[%s221 + $0x10] sm:$0xff]
      %v245 = vld [vmem:[%s221 + $0x18] sm:$0xff]
      %v246 = vld [vmem:[%s221 + $0x20] sm:$0xff]
      %v247 = vld [vmem:[%s221 + $0x28] sm:$0xff]
      %v248 = vld [vmem:[%s221 + $0x30] sm:$0xff]
      %v249 = vld [vmem:[%s221 + $0x38] sm:$0xff]
      %v250 = vld [vmem:[%s221 + $0x40] sm:$0xff]
      %v251 = vld [vmem:[%s221 + $0x48] sm:$0xff]
      %v252 = vld [vmem:[%s221 + $0x50] sm:$0xff]
      %v253 = vld [vmem:[%s221 + $0x58] sm:$0xff]
      %v254 = vld [vmem:[%s221 + $0x60] sm:$0xff]
      %v255 = vld [vmem:[%s221 + $0x68] sm:$0xff]
      %v256 = vld [vmem:[%s221 + $0x70] sm:$0xff]
      %v257 = vld [vmem:[%s221 + $0x78] sm:$0xff]
      %v258 = vld [vmem:[%s221 + $0x80] sm:$0xff]
      %v259 = vld [vmem:[%s221 + $0x88] sm:$0xff]
      %v260 = vld [vmem:[%s221 + $0x90] sm:$0xff]
      %v261 = vld [vmem:[%s221 + $0x98] sm:$0xff]
      %v262 = vld [vmem:[%s221 + $0xa0] sm:$0xff]
      %v263 = vld [vmem:[%s221 + $0xa8] sm:$0xff]
      %v264 = vld [vmem:[%s221 + $0xb0] sm:$0xff]
      %v265 = vld [vmem:[%s221 + $0xb8] sm:$0xff]
      %v266 = vld [vmem:[%s221 + $0xc0] sm:$0xff]
      %v267 = vld [vmem:[%s221 + $0xc8] sm:$0xff]
      %v268 = vld [vmem:[%s221 + $0xd0] sm:$0xff]
      %v269 = vld [vmem:[%s221 + $0xd8] sm:$0xff]
      %v270 = vld [vmem:[%s221 + $0xe0] sm:$0xff]
      %v271 = vld [vmem:[%s221 + $0xe8] sm:$0xff]
      %v272 = vld [vmem:[%s221 + $0xf0] sm:$0xff]
      %v273 = vld [vmem:[%s221 + $0xf8] sm:$0xff]
      %v274 = vld [vmem:[%s221 + $0x100] sm:$0xff]
      %v275 = vld [vmem:[%s221 + $0x108] sm:$0xff]
      %v276 = vld [vmem:[%s221 + $0x110] sm:$0xff]
      %v277 = vld [vmem:[%s221 + $0x118] sm:$0xff]
      %v278 = vld [vmem:[%s221 + $0x120] sm:$0xff]
      %v279 = vld [vmem:[%s221 + $0x128] sm:$0xff]
      %v280 = vld [vmem:[%s221 + $0x130] sm:$0xff]
      %v281 = vld [vmem:[%s221 + $0x138] sm:$0xff]
      %v282 = vld [vmem:[%s221 + $0x140] sm:$0xff]
      %v283 = vld [vmem:[%s221 + $0x148] sm:$0xff]
      %v284 = vld [vmem:[%s221 + $0x150] sm:$0xff]
      %v285 = vld [vmem:[%s221 + $0x158] sm:$0xff]
      %v286 = vld [vmem:[%s221 + $0x160] sm:$0xff]
      %v287 = vld [vmem:[%s221 + $0x168] sm:$0xff]
      %v288 = vld [vmem:[%s221 + $0x170] sm:$0xff]
      %v289 = vld [vmem:[%s221 + $0x178] sm:$0xff]
      %v290 = vld [vmem:[%s221 + $0x180] sm:$0xff]
      %v291 = vld [vmem:[%s221 + $0x188] sm:$0xff]
      %v292 = vld [vmem:[%s221 + $0x190] sm:$0xff]
      %v293 = vld [vmem:[%s221 + $0x198] sm:$0xff]
      %v294 = vld [vmem:[%s221 + $0x1a0] sm:$0xff]
      %v295 = vld [vmem:[%s221 + $0x1a8] sm:$0xff]
      %v296 = vld [vmem:[%s221 + $0x1b0] sm:$0xff]
      %v297 = vld [vmem:[%s221 + $0x1b8] sm:$0xff]
      %v298 = vld [vmem:[%s221 + $0x1c0] sm:$0xff]
      %v299 = vld [vmem:[%s221 + $0x1c8] sm:$0xff]
      %v300 = vld [vmem:[%s221 + $0x1d0] sm:$0xff]
      %v301 = vld [vmem:[%s221 + $0x1d8] sm:$0xff]
      %v302 = vld [vmem:[%s221 + $0x1e0] sm:$0xff]
      %v303 = vld [vmem:[%s221 + $0x1e8] sm:$0xff]
      %v304 = vld [vmem:[%s221 + $0x1f0] sm:$0xff]
      %v305 = vld [vmem:[%s221 + $0x1f8] sm:$0xff]
      %v306 = vld [vmem:[%s221 + $0x200] sm:$0xff]
      %v307 = vld [vmem:[%s221 + $0x208] sm:$0xff]
      %v308 = vld [vmem:[%s221 + $0x210] sm:$0xff]
      %v309 = vld [vmem:[%s221 + $0x218] sm:$0xff]
      %v310 = vld [vmem:[%s221 + $0x220] sm:$0xff]
      %v311 = vld [vmem:[%s221 + $0x228] sm:$0xff]
      %v312 = vld [vmem:[%s221 + $0x230] sm:$0xff]
      %v313 = vld [vmem:[%s221 + $0x238] sm:$0xff]
      %v314 = vld [vmem:[%s221 + $0x240] sm:$0xff]
      %v315 = vld [vmem:[%s221 + $0x248] sm:$0xff]
      %v316 = vld [vmem:[%s221 + $0x250] sm:$0xff]
      %v317 = vld [vmem:[%s221 + $0x258] sm:$0xff]
      %v318 = vld [vmem:[%s221 + $0x260] sm:$0xff]
      %v319 = vld [vmem:[%s221 + $0x268] sm:$0xff]
      %v320 = vld [vmem:[%s221 + $0x270] sm:$0xff]
      %v321 = vld [vmem:[%s221 + $0x278] sm:$0xff]
      %v322 = vld [vmem:[%s221 + $0x280] sm:$0xff]
      %v323 = vld [vmem:[%s221 + $0x288] sm:$0xff]
      %v324 = vld [vmem:[%s221 + $0x290] sm:$0xff]
      %v325 = vld [vmem:[%s221 + $0x298] sm:$0xff]
      %v326 = vld [vmem:[%s221 + $0x2a0] sm:$0xff]
      %v327 = vld [vmem:[%s221 + $0x2a8] sm:$0xff]
      %v328 = vld [vmem:[%s221 + $0x2b0] sm:$0xff]
      %v329 = vld [vmem:[%s221 + $0x2b8] sm:$0xff]
      %v330 = vld [vmem:[%s221 + $0x2c0] sm:$0xff]
      %v331 = vld [vmem:[%s221 + $0x2c8] sm:$0xff]
      %v332 = vld [vmem:[%s221 + $0x2d0] sm:$0xff]
      %v333 = vld [vmem:[%s221 + $0x2d8] sm:$0xff]
      %v334 = vld [vmem:[%s221 + $0x2e0] sm:$0xff]
      %v335 = vld [vmem:[%s221 + $0x2e8] sm:$0xff]
      %v336 = vld [vmem:[%s221 + $0x2f0] sm:$0xff]
      %v337 = vld [vmem:[%s221 + $0x2f8] sm:$0xff]
      %v338 = vld [vmem:[%s221 + $0x300] sm:$0xff]
      %v339 = vld [vmem:[%s221 + $0x308] sm:$0xff]
      %v340 = vld [vmem:[%s221 + $0x310] sm:$0xff]
      %v341 = vld [vmem:[%s221 + $0x318] sm:$0xff]
      %v342 = vld [vmem:[%s221 + $0x320] sm:$0xff]
      %v343 = vld [vmem:[%s221 + $0x328] sm:$0xff]
      %v344 = vld [vmem:[%s221 + $0x330] sm:$0xff]
      %v345 = vld [vmem:[%s221 + $0x338] sm:$0xff]
      %v346 = vld [vmem:[%s221 + $0x340] sm:$0xff]
      %v347 = vld [vmem:[%s221 + $0x348] sm:$0xff]
      %v348 = vld [vmem:[%s221 + $0x350] sm:$0xff]
      %v349 = vld [vmem:[%s221 + $0x358] sm:$0xff]
      %v350 = vld [vmem:[%s221 + $0x360] sm:$0xff]
      %v351 = vld [vmem:[%s221 + $0x368] sm:$0xff]
      %v352 = vld [vmem:[%s221 + $0x370] sm:$0xff]
      %v353 = vld [vmem:[%s221 + $0x378] sm:$0xff]
      %v354 = vld [vmem:[%s221 + $0x380] sm:$0xff]
      %v355 = vld [vmem:[%s221 + $0x388] sm:$0xff]
      %v356 = vld [vmem:[%s221 + $0x390] sm:$0xff]
      %v357 = vld [vmem:[%s221 + $0x398] sm:$0xff]
      %v358 = vld [vmem:[%s221 + $0x3a0] sm:$0xff]
      %v359 = vld [vmem:[%s221 + $0x3a8] sm:$0xff]
      %v360 = vld [vmem:[%s221 + $0x3b0] sm:$0xff]
      %v361 = vld [vmem:[%s221 + $0x3b8] sm:$0xff]
      %v362 = vld [vmem:[%s221 + $0x3c0] sm:$0xff]
      %v363 = vld [vmem:[%s221 + $0x3c8] sm:$0xff]
      %v364 = vld [vmem:[%s221 + $0x3d0] sm:$0xff]
      %v365 = vld [vmem:[%s221 + $0x3d8] sm:$0xff]
      %v366 = vld [vmem:[%s221 + $0x3e0] sm:$0xff]
      %v367 = vld [vmem:[%s221 + $0x3e8] sm:$0xff]
      %v368 = vld [vmem:[%s221 + $0x3f0] sm:$0xff]
      %v369 = vld [vmem:[%s221 + $0x3f8] sm:$0xff]
      %v370 = vld [vmem:[%s221 + $0x400] sm:$0xff]
      %v371 = vld [vmem:[%s221 + $0x408] sm:$0xff]
      %v372 = vld [vmem:[%s221 + $0x410] sm:$0xff]
      %v373 = vld [vmem:[%s221 + $0x418] sm:$0xff]
      %v374 = vld [vmem:[%s221 + $0x420] sm:$0xff]
      %v375 = vld [vmem:[%s221 + $0x428] sm:$0xff]
      %v376 = vld [vmem:[%s221 + $0x430] sm:$0xff]
      %v377 = vld [vmem:[%s221 + $0x438] sm:$0xff]
      %v378 = vld [vmem:[%s221 + $0x440] sm:$0xff]
      %v379 = vld [vmem:[%s221 + $0x448] sm:$0xff]
      %v380 = vld [vmem:[%s221 + $0x450] sm:$0xff]
      %v381 = vld [vmem:[%s221 + $0x458] sm:$0xff]
      %v382 = vld [vmem:[%s221 + $0x460] sm:$0xff]
      %v383 = vld [vmem:[%s221 + $0x468] sm:$0xff]
      %v384 = vld [vmem:[%s221 + $0x470] sm:$0xff]
      %v385 = vld [vmem:[%s221 + $0x478] sm:$0xff]
      %v386 = vld [vmem:[%s221 + $0x480] sm:$0xff]
      %v387 = vld [vmem:[%s221 + $0x488] sm:$0xff]
      %v388 = vld [vmem:[%s221 + $0x490] sm:$0xff]
      %v389 = vld [vmem:[%s221 + $0x498] sm:$0xff]
      %v390 = vld [vmem:[%s221 + $0x4a0] sm:$0xff]
      %v391 = vld [vmem:[%s221 + $0x4a8] sm:$0xff]
      %v392 = vld [vmem:[%s221 + $0x4b0] sm:$0xff]
      %v393 = vld [vmem:[%s221 + $0x4b8] sm:$0xff]
      %v394 = vld [vmem:[%s221 + $0x4c0] sm:$0xff]
      %v395 = vld [vmem:[%s221 + $0x4c8] sm:$0xff]
      %v396 = vld [vmem:[%s221 + $0x4d0] sm:$0xff]
      %v397 = vld [vmem:[%s221 + $0x4d8] sm:$0xff]
      %v398 = vld [vmem:[%s221 + $0x4e0] sm:$0xff]
      %v399 = vld [vmem:[%s221 + $0x4e8] sm:$0xff]
      %v400 = vld [vmem:[%s221 + $0x4f0] sm:$0xff]
      %v401 = vld [vmem:[%s221 + $0x4f8] sm:$0xff]
      %v402 = vld [vmem:[%s221 + $0x500] sm:$0xff]
      %v403 = vld [vmem:[%s221 + $0x508] sm:$0xff]
      %v404 = vld [vmem:[%s221 + $0x510] sm:$0xff]
      %v405 = vld [vmem:[%s221 + $0x518] sm:$0xff]
      %v406 = vld [vmem:[%s221 + $0x520] sm:$0xff]
      %v407 = vld [vmem:[%s221 + $0x528] sm:$0xff]
      %v408 = vld [vmem:[%s221 + $0x530] sm:$0xff]
      %v409 = vld [vmem:[%s221 + $0x538] sm:$0xff]
      %v410 = vld [vmem:[%s221 + $0x540] sm:$0xff]
      %v411 = vld [vmem:[%s221 + $0x548] sm:$0xff]
      %v412 = vld [vmem:[%s221 + $0x550] sm:$0xff]
      %v413 = vld [vmem:[%s221 + $0x558] sm:$0xff]
      %v414 = vld [vmem:[%s221 + $0x560] sm:$0xff]
      %v415 = vld [vmem:[%s221 + $0x568] sm:$0xff]
      %v416 = vld [vmem:[%s221 + $0x570] sm:$0xff]
      %v417 = vld [vmem:[%s221 + $0x578] sm:$0xff]
      %v418 = vld [vmem:[%s221 + $0x580] sm:$0xff]
      %v419 = vld [vmem:[%s221 + $0x588] sm:$0xff]
      %v420 = vld [vmem:[%s221 + $0x590] sm:$0xff]
      %v421 = vld [vmem:[%s221 + $0x598] sm:$0xff]
      %v422 = vld [vmem:[%s221 + $0x5a0] sm:$0xff]
      %v423 = vld [vmem:[%s221 + $0x5a8] sm:$0xff]
      %v424 = vld [vmem:[%s221 + $0x5b0] sm:$0xff]
      %v425 = vld [vmem:[%s221 + $0x5b8] sm:$0xff]
      %v426 = vld [vmem:[%s221 + $0x5c0] sm:$0xff]
      %v427 = vld [vmem:[%s221 + $0x5c8] sm:$0xff]
      %v428 = vld [vmem:[%s221 + $0x5d0] sm:$0xff]
      %v429 = vld [vmem:[%s221 + $0x5d8] sm:$0xff]
      %v430 = vld [vmem:[%s221 + $0x5e0] sm:$0xff]
      %v431 = vld [vmem:[%s221 + $0x5e8] sm:$0xff]
      %v432 = vld [vmem:[%s221 + $0x5f0] sm:$0xff]
      %v433 = vld [vmem:[%s221 + $0x5f8] sm:$0xff]
      %v434 = vld [vmem:[%s221 + $0x600] sm:$0xff]
      %v435 = vld [vmem:[%s221 + $0x608] sm:$0xff]
      %v436 = vld [vmem:[%s221 + $0x610] sm:$0xff]
      %v437 = vld [vmem:[%s221 + $0x618] sm:$0xff]
      %v438 = vld [vmem:[%s221 + $0x620] sm:$0xff]
      %v439 = vld [vmem:[%s221 + $0x628] sm:$0xff]
      %v440 = vld [vmem:[%s221 + $0x630] sm:$0xff]
      %v441 = vld [vmem:[%s221 + $0x638] sm:$0xff]
      %v442 = vld [vmem:[%s221 + $0x640] sm:$0xff]
      %v443 = vld [vmem:[%s221 + $0x648] sm:$0xff]
      %v444 = vld [vmem:[%s221 + $0x650] sm:$0xff]
      %v445 = vld [vmem:[%s221 + $0x658] sm:$0xff]
      %v446 = vld [vmem:[%s221 + $0x660] sm:$0xff]
      %v447 = vld [vmem:[%s221 + $0x668] sm:$0xff]
      %v448 = vld [vmem:[%s221 + $0x670] sm:$0xff]
      %v449 = vld [vmem:[%s221 + $0x678] sm:$0xff]
      %v450 = vld [vmem:[%s221 + $0x680] sm:$0xff]
      %v451 = vld [vmem:[%s221 + $0x688] sm:$0xff]
      %v452 = vld [vmem:[%s221 + $0x690] sm:$0xff]
      %v453 = vld [vmem:[%s221 + $0x698] sm:$0xff]
      %v454 = vld [vmem:[%s221 + $0x6a0] sm:$0xff]
      %v455 = vld [vmem:[%s221 + $0x6a8] sm:$0xff]
      %v456 = vld [vmem:[%s221 + $0x6b0] sm:$0xff]
      %v457 = vld [vmem:[%s221 + $0x6b8] sm:$0xff]
      %v458 = vld [vmem:[%s221 + $0x6c0] sm:$0xff]
      %v459 = vld [vmem:[%s221 + $0x6c8] sm:$0xff]
      %v460 = vld [vmem:[%s221 + $0x6d0] sm:$0xff]
      %v461 = vld [vmem:[%s221 + $0x6d8] sm:$0xff]
      %v462 = vld [vmem:[%s221 + $0x6e0] sm:$0xff]
      %v463 = vld [vmem:[%s221 + $0x6e8] sm:$0xff]
      %v464 = vld [vmem:[%s221 + $0x6f0] sm:$0xff]
      %v465 = vld [vmem:[%s221 + $0x6f8] sm:$0xff]
      %v466 = vld [vmem:[%s221 + $0x700] sm:$0xff]
      %v467 = vld [vmem:[%s221 + $0x708] sm:$0xff]
      %v468 = vld [vmem:[%s221 + $0x710] sm:$0xff]
      %v469 = vld [vmem:[%s221 + $0x718] sm:$0xff]
      %v470 = vld [vmem:[%s221 + $0x720] sm:$0xff]
      %v471 = vld [vmem:[%s221 + $0x728] sm:$0xff]
      %v472 = vld [vmem:[%s221 + $0x730] sm:$0xff]
      %v473 = vld [vmem:[%s221 + $0x738] sm:$0xff]
      %v474 = vld [vmem:[%s221 + $0x740] sm:$0xff]
      %v475 = vld [vmem:[%s221 + $0x748] sm:$0xff]
      %v476 = vld [vmem:[%s221 + $0x750] sm:$0xff]
      %v477 = vld [vmem:[%s221 + $0x758] sm:$0xff]
      %v478 = vld [vmem:[%s221 + $0x760] sm:$0xff]
      %v479 = vld [vmem:[%s221 + $0x768] sm:$0xff]
      %v480 = vld [vmem:[%s221 + $0x770] sm:$0xff]
      %v481 = vld [vmem:[%s221 + $0x778] sm:$0xff]
      %v482 = vld [vmem:[%s221 + $0x780] sm:$0xff]
      %v483 = vld [vmem:[%s221 + $0x788] sm:$0xff]
      %v484 = vld [vmem:[%s221 + $0x790] sm:$0xff]
      %v485 = vld [vmem:[%s221 + $0x798] sm:$0xff]
      %v486 = vld [vmem:[%s221 + $0x7a0] sm:$0xff]
      %v487 = vld [vmem:[%s221 + $0x7a8] sm:$0xff]
      %v488 = vld [vmem:[%s221 + $0x7b0] sm:$0xff]
      %v489 = vld [vmem:[%s221 + $0x7b8] sm:$0xff]
      %v490 = vld [vmem:[%s221 + $0x7c0] sm:$0xff]
      %v491 = vld [vmem:[%s221 + $0x7c8] sm:$0xff]
      %v492 = vld [vmem:[%s221 + $0x7d0] sm:$0xff]
      %v493 = vld [vmem:[%s221 + $0x7d8] sm:$0xff]
      %v494 = vld [vmem:[%s221 + $0x7e0] sm:$0xff]
      %v495 = vld [vmem:[%s221 + $0x7e8] sm:$0xff]
      %v496 = vld [vmem:[%s221 + $0x7f0] sm:$0xff]
      %v497 = vld [vmem:[%s221 + $0x7f8] sm:$0xff]
      %v498 = vld [vmem:[%s221 + $0x800] sm:$0xff]
      %v499 = vld [vmem:[%s221 + $0x808] sm:$0xff]
      %v500 = vld [vmem:[%s221 + $0x810] sm:$0xff]
      %v501 = vld [vmem:[%s221 + $0x818] sm:$0xff]
      %v502 = vld [vmem:[%s221 + $0x820] sm:$0xff]
      %v503 = vld [vmem:[%s221 + $0x828] sm:$0xff]
      %v504 = vld [vmem:[%s221 + $0x830] sm:$0xff]
      %v505 = vld [vmem:[%s221 + $0x838] sm:$0xff]
      %v506 = vld [vmem:[%s221 + $0x840] sm:$0xff]
      %v507 = vld [vmem:[%s221 + $0x848] sm:$0xff]
      %v508 = vld [vmem:[%s221 + $0x850] sm:$0xff]
      %v509 = vld [vmem:[%s221 + $0x858] sm:$0xff]
      %v510 = vld [vmem:[%s221 + $0x860] sm:$0xff]
      %v511 = vld [vmem:[%s221 + $0x868] sm:$0xff]
      %v512 = vld [vmem:[%s221 + $0x870] sm:$0xff]
      %v513 = vld [vmem:[%s221 + $0x878] sm:$0xff]
      %v514 = vld [vmem:[%s221 + $0x880] sm:$0xff]
      %v515 = vld [vmem:[%s221 + $0x888] sm:$0xff]
      %v516 = vld [vmem:[%s221 + $0x890] sm:$0xff]
      %v517 = vld [vmem:[%s221 + $0x898] sm:$0xff]
      %v518 = vld [vmem:[%s221 + $0x8a0] sm:$0xff]
      %v519 = vld [vmem:[%s221 + $0x8a8] sm:$0xff]
      %v520 = vld [vmem:[%s221 + $0x8b0] sm:$0xff]
      %v521 = vld [vmem:[%s221 + $0x8b8] sm:$0xff]
      %v522 = vld [vmem:[%s221 + $0x8c0] sm:$0xff]
      %v523 = vld [vmem:[%s221 + $0x8c8] sm:$0xff]
      %v524 = vld [vmem:[%s221 + $0x8d0] sm:$0xff]
      %v525 = vld [vmem:[%s221 + $0x8d8] sm:$0xff]
      %v526 = vld [vmem:[%s221 + $0x8e0] sm:$0xff]
      %v527 = vld [vmem:[%s221 + $0x8e8] sm:$0xff]
      %v528 = vld [vmem:[%s221 + $0x8f0] sm:$0xff]
      %v529 = vld [vmem:[%s221 + $0x8f8] sm:$0xff]
      %v530 = vpack.c.bf16 %v248, %v242
      %v531 = vpack.c.bf16 %v249, %v243
      %v532 = vpack.c.bf16 %v250, %v244
      %v533 = vpack.c.bf16 %v251, %v245
      %v534 = vpack.c.bf16 %v252, %v246
      %v535 = vpack.c.bf16 %v253, %v247
      %v536 = vpack.c.bf16 %v260, %v254
      %v537 = vpack.c.bf16 %v261, %v255
      %v538 = vpack.c.bf16 %v262, %v256
      %v539 = vpack.c.bf16 %v263, %v257
      %v540 = vpack.c.bf16 %v264, %v258
      %v541 = vpack.c.bf16 %v265, %v259
      %v542 = vpack.c.bf16 %v272, %v266
      %v543 = vpack.c.bf16 %v273, %v267
      %v544 = vpack.c.bf16 %v274, %v268
      %v545 = vpack.c.bf16 %v275, %v269
      %v546 = vpack.c.bf16 %v276, %v270
      %v547 = vpack.c.bf16 %v277, %v271
      %v548 = vpack.c.bf16 %v284, %v278
      %v549 = vpack.c.bf16 %v285, %v279
      %v550 = vpack.c.bf16 %v286, %v280
      %v551 = vpack.c.bf16 %v287, %v281
      %v552 = vpack.c.bf16 %v288, %v282
      %v553 = vpack.c.bf16 %v289, %v283
      %v554 = vpack.c.bf16 %v296, %v290
      %v555 = vpack.c.bf16 %v297, %v291
      %v556 = vpack.c.bf16 %v298, %v292
      %v557 = vpack.c.bf16 %v299, %v293
      %v558 = vpack.c.bf16 %v300, %v294
      %v559 = vpack.c.bf16 %v301, %v295
      %v560 = vpack.c.bf16 %v308, %v302
      %v561 = vpack.c.bf16 %v309, %v303
      %v562 = vpack.c.bf16 %v310, %v304
      %v563 = vpack.c.bf16 %v311, %v305
      %v564 = vpack.c.bf16 %v312, %v306
      %v565 = vpack.c.bf16 %v313, %v307
      %v566 = vpack.c.bf16 %v320, %v314
      %v567 = vpack.c.bf16 %v321, %v315
      %v568 = vpack.c.bf16 %v322, %v316
      %v569 = vpack.c.bf16 %v323, %v317
      %v570 = vpack.c.bf16 %v324, %v318
      %v571 = vpack.c.bf16 %v325, %v319
      %v572 = vpack.c.bf16 %v332, %v326
      %v573 = vpack.c.bf16 %v333, %v327
      %v574 = vpack.c.bf16 %v334, %v328
      %v575 = vpack.c.bf16 %v335, %v329
      %v576 = vpack.c.bf16 %v336, %v330
      %v577 = vpack.c.bf16 %v337, %v331
      %v578 = vpack.c.bf16 %v344, %v338
      %v579 = vpack.c.bf16 %v345, %v339
      %v580 = vpack.c.bf16 %v346, %v340
      %v581 = vpack.c.bf16 %v347, %v341
      %v582 = vpack.c.bf16 %v348, %v342
      %v583 = vpack.c.bf16 %v349, %v343
      %v584 = vpack.c.bf16 %v356, %v350
      %v585 = vpack.c.bf16 %v357, %v351
      %v586 = vpack.c.bf16 %v358, %v352
      %v587 = vpack.c.bf16 %v359, %v353
      %v588 = vpack.c.bf16 %v360, %v354
      %v589 = vpack.c.bf16 %v361, %v355
      %v590 = vpack.c.bf16 %v368, %v362
      %v591 = vpack.c.bf16 %v369, %v363
      %v592 = vpack.c.bf16 %v370, %v364
      %v593 = vpack.c.bf16 %v371, %v365
      %v594 = vpack.c.bf16 %v372, %v366
      %v595 = vpack.c.bf16 %v373, %v367
      %v596 = vpack.c.bf16 %v380, %v374
      %v597 = vpack.c.bf16 %v381, %v375
      %v598 = vpack.c.bf16 %v382, %v376
      %v599 = vpack.c.bf16 %v383, %v377
      %v600 = vpack.c.bf16 %v384, %v378
      %v601 = vpack.c.bf16 %v385, %v379
      %v602 = vpack.c.bf16 %v392, %v386
      %v603 = vpack.c.bf16 %v393, %v387
      %v604 = vpack.c.bf16 %v394, %v388
      %v605 = vpack.c.bf16 %v395, %v389
      %v606 = vpack.c.bf16 %v396, %v390
      %v607 = vpack.c.bf16 %v397, %v391
      %v608 = vpack.c.bf16 %v404, %v398
      %v609 = vpack.c.bf16 %v405, %v399
      %v610 = vpack.c.bf16 %v406, %v400
      %v611 = vpack.c.bf16 %v407, %v401
      %v612 = vpack.c.bf16 %v408, %v402
      %v613 = vpack.c.bf16 %v409, %v403
      %v614 = vpack.c.bf16 %v416, %v410
      %v615 = vpack.c.bf16 %v417, %v411
      %v616 = vpack.c.bf16 %v418, %v412
      %v617 = vpack.c.bf16 %v419, %v413
      %v618 = vpack.c.bf16 %v420, %v414
      %v619 = vpack.c.bf16 %v421, %v415
      %v620 = vpack.c.bf16 %v428, %v422
      %v621 = vpack.c.bf16 %v429, %v423
      %v622 = vpack.c.bf16 %v430, %v424
      %v623 = vpack.c.bf16 %v431, %v425
      %v624 = vpack.c.bf16 %v432, %v426
      %v625 = vpack.c.bf16 %v433, %v427
      %v626 = vpack.c.bf16 %v440, %v434
      %v627 = vpack.c.bf16 %v441, %v435
      %v628 = vpack.c.bf16 %v442, %v436
      %v629 = vpack.c.bf16 %v443, %v437
      %v630 = vpack.c.bf16 %v444, %v438
      %v631 = vpack.c.bf16 %v445, %v439
      %v632 = vpack.c.bf16 %v452, %v446
      %v633 = vpack.c.bf16 %v453, %v447
      %v634 = vpack.c.bf16 %v454, %v448
      %v635 = vpack.c.bf16 %v455, %v449
      %v636 = vpack.c.bf16 %v456, %v450
      %v637 = vpack.c.bf16 %v457, %v451
      %v638 = vpack.c.bf16 %v464, %v458
      %v639 = vpack.c.bf16 %v465, %v459
      %v640 = vpack.c.bf16 %v466, %v460
      %v641 = vpack.c.bf16 %v467, %v461
      %v642 = vpack.c.bf16 %v468, %v462
      %v643 = vpack.c.bf16 %v469, %v463
      %v644 = vpack.c.bf16 %v476, %v470
      %v645 = vpack.c.bf16 %v477, %v471
      %v646 = vpack.c.bf16 %v478, %v472
      %v647 = vpack.c.bf16 %v479, %v473
      %v648 = vpack.c.bf16 %v480, %v474
      %v649 = vpack.c.bf16 %v481, %v475
      %v650 = vpack.c.bf16 %v488, %v482
      %v651 = vpack.c.bf16 %v489, %v483
      %v652 = vpack.c.bf16 %v490, %v484
      %v653 = vpack.c.bf16 %v491, %v485
      %v654 = vpack.c.bf16 %v492, %v486
      %v655 = vpack.c.bf16 %v493, %v487
      %v656 = vpack.c.bf16 %v500, %v494
      %v657 = vpack.c.bf16 %v501, %v495
      %v658 = vpack.c.bf16 %v502, %v496
      %v659 = vpack.c.bf16 %v503, %v497
      %v660 = vpack.c.bf16 %v504, %v498
      %v661 = vpack.c.bf16 %v505, %v499
      %v662 = vpack.c.bf16 %v512, %v506
      %v663 = vpack.c.bf16 %v513, %v507
      %v664 = vpack.c.bf16 %v514, %v508
      %v665 = vpack.c.bf16 %v515, %v509
      %v666 = vpack.c.bf16 %v516, %v510
      %v667 = vpack.c.bf16 %v517, %v511
      %v668 = vpack.c.bf16 %v524, %v518
      %v669 = vpack.c.bf16 %v525, %v519
      %v670 = vpack.c.bf16 %v526, %v520
      %v671 = vpack.c.bf16 %v527, %v521
      %v672 = vpack.c.bf16 %v528, %v522
      %v673 = vpack.c.bf16 %v529, %v523
      %v674 = vld [vmem:[%s2] sm:$0xff]
      %v675 = vld [vmem:[%s2 + $0x8] sm:$0xff]
      %v676 = vld [vmem:[%s2 + $0x10] sm:$0xff]
      %v677 = vld [vmem:[%s2 + $0x18] sm:$0xff]
      %v678 = vld [vmem:[%s2 + $0x20] sm:$0xff]
      %v679 = vld [vmem:[%s2 + $0x28] sm:$0xff]
      %v680 = vld [vmem:[%s2 + $0x30] sm:$0xff]
      %v681 = vld [vmem:[%s2 + $0x38] sm:$0xff]
      %v682 = vld [vmem:[%s2 + $0x40] sm:$0xff]
      %v683 = vld [vmem:[%s2 + $0x48] sm:$0xff]
      %v684 = vld [vmem:[%s2 + $0x50] sm:$0xff]
      %v685 = vld [vmem:[%s2 + $0x58] sm:$0xff]
      %v686 = vld [vmem:[%s2 + $0x60] sm:$0xff]
      %v687 = vld [vmem:[%s2 + $0x68] sm:$0xff]
      %v688 = vld [vmem:[%s2 + $0x70] sm:$0xff]
      %v689 = vld [vmem:[%s2 + $0x78] sm:$0xff]
      %v690 = vld [vmem:[%s2 + $0x80] sm:$0xff]
      %v691 = vld [vmem:[%s2 + $0x88] sm:$0xff]
      %v692 = vld [vmem:[%s2 + $0x90] sm:$0xff]
      %v693 = vld [vmem:[%s2 + $0x98] sm:$0xff]
      %v694 = vld [vmem:[%s2 + $0xa0] sm:$0xff]
      %v695 = vld [vmem:[%s2 + $0xa8] sm:$0xff]
      %v696 = vld [vmem:[%s2 + $0xb0] sm:$0xff]
      %v697 = vld [vmem:[%s2 + $0xb8] sm:$0xff]
      %v698 = vld [vmem:[%s2 + $0xc0] sm:$0xff]
      %v699 = vld [vmem:[%s2 + $0xc8] sm:$0xff]
      %v700 = vld [vmem:[%s2 + $0xd0] sm:$0xff]
      %v701 = vld [vmem:[%s2 + $0xd8] sm:$0xff]
      %v702 = vld [vmem:[%s2 + $0xe0] sm:$0xff]
      %v703 = vld [vmem:[%s2 + $0xe8] sm:$0xff]
      %v704 = vld [vmem:[%s2 + $0xf0] sm:$0xff]
      %v705 = vld [vmem:[%s2 + $0xf8] sm:$0xff]
      %v706 = vld [vmem:[%s2 + $0x100] sm:$0xff]
      %v707 = vld [vmem:[%s2 + $0x108] sm:$0xff]
      %v708 = vld [vmem:[%s2 + $0x110] sm:$0xff]
      %v709 = vld [vmem:[%s2 + $0x118] sm:$0xff]
      %v710 = vld [vmem:[%s2 + $0x120] sm:$0xff]
      %v711 = vld [vmem:[%s2 + $0x128] sm:$0xff]
      %v712 = vld [vmem:[%s2 + $0x130] sm:$0xff]
      %v713 = vld [vmem:[%s2 + $0x138] sm:$0xff]
      %v714 = vld [vmem:[%s2 + $0x140] sm:$0xff]
      %v715 = vld [vmem:[%s2 + $0x148] sm:$0xff]
      %v716 = vld [vmem:[%s2 + $0x150] sm:$0xff]
      %v717 = vld [vmem:[%s2 + $0x158] sm:$0xff]
      %v718 = vld [vmem:[%s2 + $0x160] sm:$0xff]
      %v719 = vld [vmem:[%s2 + $0x168] sm:$0xff]
      %v720 = vld [vmem:[%s2 + $0x170] sm:$0xff]
      %v721 = vld [vmem:[%s2 + $0x178] sm:$0xff]
      %v722 = vld [vmem:[%s2 + $0x180] sm:$0xff]
      %v723 = vld [vmem:[%s2 + $0x188] sm:$0xff]
      %v724 = vld [vmem:[%s2 + $0x190] sm:$0xff]
      %v725 = vld [vmem:[%s2 + $0x198] sm:$0xff]
      %v726 = vld [vmem:[%s2 + $0x1a0] sm:$0xff]
      %v727 = vld [vmem:[%s2 + $0x1a8] sm:$0xff]
      %v728 = vld [vmem:[%s2 + $0x1b0] sm:$0xff]
      %v729 = vld [vmem:[%s2 + $0x1b8] sm:$0xff]
      %v730 = vld [vmem:[%s2 + $0x1c0] sm:$0xff]
      %v731 = vld [vmem:[%s2 + $0x1c8] sm:$0xff]
      %v732 = vld [vmem:[%s2 + $0x1d0] sm:$0xff]
      %v733 = vld [vmem:[%s2 + $0x1d8] sm:$0xff]
      %v734 = vld [vmem:[%s2 + $0x1e0] sm:$0xff]
      %v735 = vld [vmem:[%s2 + $0x1e8] sm:$0xff]
      %v736 = vld [vmem:[%s2 + $0x1f0] sm:$0xff]
      %v737 = vld [vmem:[%s2 + $0x1f8] sm:$0xff]
      %v738 = vld [vmem:[%s2 + $0x200] sm:$0xff]
      %v739 = vld [vmem:[%s2 + $0x208] sm:$0xff]
      %v740 = vld [vmem:[%s2 + $0x210] sm:$0xff]
      %v741 = vld [vmem:[%s2 + $0x218] sm:$0xff]
      %v742 = vld [vmem:[%s2 + $0x220] sm:$0xff]
      %v743 = vld [vmem:[%s2 + $0x228] sm:$0xff]
      %v744 = vld [vmem:[%s2 + $0x230] sm:$0xff]
      %v745 = vld [vmem:[%s2 + $0x238] sm:$0xff]
      %v746 = vld [vmem:[%s2 + $0x240] sm:$0xff]
      %v747 = vld [vmem:[%s2 + $0x248] sm:$0xff]
      %v748 = vld [vmem:[%s2 + $0x250] sm:$0xff]
      %v749 = vld [vmem:[%s2 + $0x258] sm:$0xff]
      %v750 = vld [vmem:[%s2 + $0x260] sm:$0xff]
      %v751 = vld [vmem:[%s2 + $0x268] sm:$0xff]
      %v752 = vld [vmem:[%s2 + $0x270] sm:$0xff]
      %v753 = vld [vmem:[%s2 + $0x278] sm:$0xff]
      %v754 = vld [vmem:[%s2 + $0x280] sm:$0xff]
      %v755 = vld [vmem:[%s2 + $0x288] sm:$0xff]
      %v756 = vld [vmem:[%s2 + $0x290] sm:$0xff]
      %v757 = vld [vmem:[%s2 + $0x298] sm:$0xff]
      %v758 = vld [vmem:[%s2 + $0x2a0] sm:$0xff]
      %v759 = vld [vmem:[%s2 + $0x2a8] sm:$0xff]
      %v760 = vld [vmem:[%s2 + $0x2b0] sm:$0xff]
      %v761 = vld [vmem:[%s2 + $0x2b8] sm:$0xff]
      %v762 = vld [vmem:[%s2 + $0x2c0] sm:$0xff]
      %v763 = vld [vmem:[%s2 + $0x2c8] sm:$0xff]
      %v764 = vld [vmem:[%s2 + $0x2d0] sm:$0xff]
      %v765 = vld [vmem:[%s2 + $0x2d8] sm:$0xff]
      %v766 = vld [vmem:[%s2 + $0x2e0] sm:$0xff]
      %v767 = vld [vmem:[%s2 + $0x2e8] sm:$0xff]
      %v768 = vld [vmem:[%s2 + $0x2f0] sm:$0xff]
      %v769 = vld [vmem:[%s2 + $0x2f8] sm:$0xff]
      %v770 = vld [vmem:[%s2 + $0x300] sm:$0xff]
      %v771 = vld [vmem:[%s2 + $0x308] sm:$0xff]
      %v772 = vld [vmem:[%s2 + $0x310] sm:$0xff]
      %v773 = vld [vmem:[%s2 + $0x318] sm:$0xff]
      %v774 = vld [vmem:[%s2 + $0x320] sm:$0xff]
      %v775 = vld [vmem:[%s2 + $0x328] sm:$0xff]
      %v776 = vld [vmem:[%s2 + $0x330] sm:$0xff]
      %v777 = vld [vmem:[%s2 + $0x338] sm:$0xff]
      %v778 = vld [vmem:[%s2 + $0x340] sm:$0xff]
      %v779 = vld [vmem:[%s2 + $0x348] sm:$0xff]
      %v780 = vld [vmem:[%s2 + $0x350] sm:$0xff]
      %v781 = vld [vmem:[%s2 + $0x358] sm:$0xff]
      %v782 = vld [vmem:[%s2 + $0x360] sm:$0xff]
      %v783 = vld [vmem:[%s2 + $0x368] sm:$0xff]
      %v784 = vld [vmem:[%s2 + $0x370] sm:$0xff]
      %v785 = vld [vmem:[%s2 + $0x378] sm:$0xff]
      %v786 = vld [vmem:[%s2 + $0x380] sm:$0xff]
      %v787 = vld [vmem:[%s2 + $0x388] sm:$0xff]
      %v788 = vld [vmem:[%s2 + $0x390] sm:$0xff]
      %v789 = vld [vmem:[%s2 + $0x398] sm:$0xff]
      %v790 = vld [vmem:[%s2 + $0x3a0] sm:$0xff]
      %v791 = vld [vmem:[%s2 + $0x3a8] sm:$0xff]
      %v792 = vld [vmem:[%s2 + $0x3b0] sm:$0xff]
      %v793 = vld [vmem:[%s2 + $0x3b8] sm:$0xff]
      %v794 = vld [vmem:[%s2 + $0x3c0] sm:$0xff]
      %v795 = vld [vmem:[%s2 + $0x3c8] sm:$0xff]
      %v796 = vld [vmem:[%s2 + $0x3d0] sm:$0xff]
      %v797 = vld [vmem:[%s2 + $0x3d8] sm:$0xff]
      %v798 = vld [vmem:[%s2 + $0x3e0] sm:$0xff]
      %v799 = vld [vmem:[%s2 + $0x3e8] sm:$0xff]
      %v800 = vld [vmem:[%s2 + $0x3f0] sm:$0xff]
      %v801 = vld [vmem:[%s2 + $0x3f8] sm:$0xff]
      %v802 = vld [vmem:[%s2 + $0x400] sm:$0xff]
      %v803 = vld [vmem:[%s2 + $0x408] sm:$0xff]
      %v804 = vld [vmem:[%s2 + $0x410] sm:$0xff]
      %v805 = vld [vmem:[%s2 + $0x418] sm:$0xff]
      %v806 = vld [vmem:[%s2 + $0x420] sm:$0xff]
      %v807 = vld [vmem:[%s2 + $0x428] sm:$0xff]
      %v808 = vld [vmem:[%s2 + $0x430] sm:$0xff]
      %v809 = vld [vmem:[%s2 + $0x438] sm:$0xff]
      %v810 = vld [vmem:[%s2 + $0x440] sm:$0xff]
      %v811 = vld [vmem:[%s2 + $0x448] sm:$0xff]
      %v812 = vld [vmem:[%s2 + $0x450] sm:$0xff]
      %v813 = vld [vmem:[%s2 + $0x458] sm:$0xff]
      %v814 = vld [vmem:[%s2 + $0x460] sm:$0xff]
      %v815 = vld [vmem:[%s2 + $0x468] sm:$0xff]
      %v816 = vld [vmem:[%s2 + $0x470] sm:$0xff]
      %v817 = vld [vmem:[%s2 + $0x478] sm:$0xff]
      %v818 = vld [vmem:[%s2 + $0x480] sm:$0xff]
      %v819 = vld [vmem:[%s2 + $0x488] sm:$0xff]
      %v820 = vld [vmem:[%s2 + $0x490] sm:$0xff]
      %v821 = vld [vmem:[%s2 + $0x498] sm:$0xff]
      %v822 = vld [vmem:[%s2 + $0x4a0] sm:$0xff]
      %v823 = vld [vmem:[%s2 + $0x4a8] sm:$0xff]
      %v824 = vld [vmem:[%s2 + $0x4b0] sm:$0xff]
      %v825 = vld [vmem:[%s2 + $0x4b8] sm:$0xff]
      %v826 = vld [vmem:[%s2 + $0x4c0] sm:$0xff]
      %v827 = vld [vmem:[%s2 + $0x4c8] sm:$0xff]
      %v828 = vld [vmem:[%s2 + $0x4d0] sm:$0xff]
      %v829 = vld [vmem:[%s2 + $0x4d8] sm:$0xff]
      %v830 = vld [vmem:[%s2 + $0x4e0] sm:$0xff]
      %v831 = vld [vmem:[%s2 + $0x4e8] sm:$0xff]
      %v832 = vld [vmem:[%s2 + $0x4f0] sm:$0xff]
      %v833 = vld [vmem:[%s2 + $0x4f8] sm:$0xff]
      %v834 = vld [vmem:[%s2 + $0x500] sm:$0xff]
      %v835 = vld [vmem:[%s2 + $0x508] sm:$0xff]
      %v836 = vld [vmem:[%s2 + $0x510] sm:$0xff]
      %v837 = vld [vmem:[%s2 + $0x518] sm:$0xff]
      %v838 = vld [vmem:[%s2 + $0x520] sm:$0xff]
      %v839 = vld [vmem:[%s2 + $0x528] sm:$0xff]
      %v840 = vld [vmem:[%s2 + $0x530] sm:$0xff]
      %v841 = vld [vmem:[%s2 + $0x538] sm:$0xff]
      %v842 = vld [vmem:[%s2 + $0x540] sm:$0xff]
      %v843 = vld [vmem:[%s2 + $0x548] sm:$0xff]
      %v844 = vld [vmem:[%s2 + $0x550] sm:$0xff]
      %v845 = vld [vmem:[%s2 + $0x558] sm:$0xff]
      %v846 = vld [vmem:[%s2 + $0x560] sm:$0xff]
      %v847 = vld [vmem:[%s2 + $0x568] sm:$0xff]
      %v848 = vld [vmem:[%s2 + $0x570] sm:$0xff]
      %v849 = vld [vmem:[%s2 + $0x578] sm:$0xff]
      %v850 = vld [vmem:[%s2 + $0x580] sm:$0xff]
      %v851 = vld [vmem:[%s2 + $0x588] sm:$0xff]
      %v852 = vld [vmem:[%s2 + $0x590] sm:$0xff]
      %v853 = vld [vmem:[%s2 + $0x598] sm:$0xff]
      %v854 = vld [vmem:[%s2 + $0x5a0] sm:$0xff]
      %v855 = vld [vmem:[%s2 + $0x5a8] sm:$0xff]
      %v856 = vld [vmem:[%s2 + $0x5b0] sm:$0xff]
      %v857 = vld [vmem:[%s2 + $0x5b8] sm:$0xff]
      %v858 = vld [vmem:[%s2 + $0x5c0] sm:$0xff]
      %v859 = vld [vmem:[%s2 + $0x5c8] sm:$0xff]
      %v860 = vld [vmem:[%s2 + $0x5d0] sm:$0xff]
      %v861 = vld [vmem:[%s2 + $0x5d8] sm:$0xff]
      %v862 = vld [vmem:[%s2 + $0x5e0] sm:$0xff]
      %v863 = vld [vmem:[%s2 + $0x5e8] sm:$0xff]
      %v864 = vld [vmem:[%s2 + $0x5f0] sm:$0xff]
      %v865 = vld [vmem:[%s2 + $0x5f8] sm:$0xff]
      %v866 = vpack.c.bf16 %v676, %v674
      %v867 = vpack.c.bf16 %v677, %v675
      %v868 = vpack.c.bf16 %v680, %v678
      %v869 = vpack.c.bf16 %v681, %v679
      %v870 = vpack.c.bf16 %v684, %v682
      %v871 = vpack.c.bf16 %v685, %v683
      %v872 = vpack.c.bf16 %v688, %v686
      %v873 = vpack.c.bf16 %v689, %v687
      %v874 = vpack.c.bf16 %v692, %v690
      %v875 = vpack.c.bf16 %v693, %v691
      %v876 = vpack.c.bf16 %v696, %v694
      %v877 = vpack.c.bf16 %v697, %v695
      %v878 = vpack.c.bf16 %v700, %v698
      %v879 = vpack.c.bf16 %v701, %v699
      %v880 = vpack.c.bf16 %v704, %v702
      %v881 = vpack.c.bf16 %v705, %v703
      %v882 = vpack.c.bf16 %v708, %v706
      %v883 = vpack.c.bf16 %v709, %v707
      %v884 = vpack.c.bf16 %v712, %v710
      %v885 = vpack.c.bf16 %v713, %v711
      %v886 = vpack.c.bf16 %v716, %v714
      %v887 = vpack.c.bf16 %v717, %v715
      %v888 = vpack.c.bf16 %v720, %v718
      %v889 = vpack.c.bf16 %v721, %v719
      %v890 = vpack.c.bf16 %v724, %v722
      %v891 = vpack.c.bf16 %v725, %v723
      %v892 = vpack.c.bf16 %v728, %v726
      %v893 = vpack.c.bf16 %v729, %v727
      %v894 = vpack.c.bf16 %v732, %v730
      %v895 = vpack.c.bf16 %v733, %v731
      %v896 = vpack.c.bf16 %v736, %v734
      %v897 = vpack.c.bf16 %v737, %v735
      %v898 = vpack.c.bf16 %v740, %v738
      %v899 = vpack.c.bf16 %v741, %v739
      %v900 = vpack.c.bf16 %v744, %v742
      %v901 = vpack.c.bf16 %v745, %v743
      %v902 = vpack.c.bf16 %v748, %v746
      %v903 = vpack.c.bf16 %v749, %v747
      %v904 = vpack.c.bf16 %v752, %v750
      %v905 = vpack.c.bf16 %v753, %v751
      %v906 = vpack.c.bf16 %v756, %v754
      %v907 = vpack.c.bf16 %v757, %v755
      %v908 = vpack.c.bf16 %v760, %v758
      %v909 = vpack.c.bf16 %v761, %v759
      %v910 = vpack.c.bf16 %v764, %v762
      %v911 = vpack.c.bf16 %v765, %v763
      %v912 = vpack.c.bf16 %v768, %v766
      %v913 = vpack.c.bf16 %v769, %v767
      %v914 = vpack.c.bf16 %v772, %v770
      %v915 = vpack.c.bf16 %v773, %v771
      %v916 = vpack.c.bf16 %v776, %v774
      %v917 = vpack.c.bf16 %v777, %v775
      %v918 = vpack.c.bf16 %v780, %v778
      %v919 = vpack.c.bf16 %v781, %v779
      %v920 = vpack.c.bf16 %v784, %v782
      %v921 = vpack.c.bf16 %v785, %v783
      %v922 = vpack.c.bf16 %v788, %v786
      %v923 = vpack.c.bf16 %v789, %v787
      %v924 = vpack.c.bf16 %v792, %v790
      %v925 = vpack.c.bf16 %v793, %v791
      %v926 = vpack.c.bf16 %v796, %v794
      %v927 = vpack.c.bf16 %v797, %v795
      %v928 = vpack.c.bf16 %v800, %v798
      %v929 = vpack.c.bf16 %v801, %v799
      %v930 = vpack.c.bf16 %v804, %v802
      %v931 = vpack.c.bf16 %v805, %v803
      %v932 = vpack.c.bf16 %v808, %v806
      %v933 = vpack.c.bf16 %v809, %v807
      %v934 = vpack.c.bf16 %v812, %v810
      %v935 = vpack.c.bf16 %v813, %v811
      %v936 = vpack.c.bf16 %v816, %v814
      %v937 = vpack.c.bf16 %v817, %v815
      %v938 = vpack.c.bf16 %v820, %v818
      %v939 = vpack.c.bf16 %v821, %v819
      %v940 = vpack.c.bf16 %v824, %v822
      %v941 = vpack.c.bf16 %v825, %v823
      %v942 = vpack.c.bf16 %v828, %v826
      %v943 = vpack.c.bf16 %v829, %v827
      %v944 = vpack.c.bf16 %v832, %v830
      %v945 = vpack.c.bf16 %v833, %v831
      %v946 = vpack.c.bf16 %v836, %v834
      %v947 = vpack.c.bf16 %v837, %v835
      %v948 = vpack.c.bf16 %v840, %v838
      %v949 = vpack.c.bf16 %v841, %v839
      %v950 = vpack.c.bf16 %v844, %v842
      %v951 = vpack.c.bf16 %v845, %v843
      %v952 = vpack.c.bf16 %v848, %v846
      %v953 = vpack.c.bf16 %v849, %v847
      %v954 = vpack.c.bf16 %v852, %v850
      %v955 = vpack.c.bf16 %v853, %v851
      %v956 = vpack.c.bf16 %v856, %v854
      %v957 = vpack.c.bf16 %v857, %v855
      %v958 = vpack.c.bf16 %v860, %v858
      %v959 = vpack.c.bf16 %v861, %v859
      %v960 = vpack.c.bf16 %v864, %v862
      %v961 = vpack.c.bf16 %v865, %v863
      %v962 = vld [vmem:[%s227] sm:$0xff]
      %v963 = vld [vmem:[%s227 + $0x8] sm:$0xff]
      %v964 = vld [vmem:[%s227 + $0x10] sm:$0xff]
      %v965 = vld [vmem:[%s227 + $0x18] sm:$0xff]
      %v966 = vld [vmem:[%s227 + $0x20] sm:$0xff]
      %v967 = vld [vmem:[%s227 + $0x28] sm:$0xff]
      %v968 = vld [vmem:[%s227 + $0x30] sm:$0xff]
      %v969 = vld [vmem:[%s227 + $0x38] sm:$0xff]
      %v970 = vld [vmem:[%s227 + $0x40] sm:$0xff]
      %v971 = vld [vmem:[%s227 + $0x48] sm:$0xff]
      %v972 = vld [vmem:[%s227 + $0x50] sm:$0xff]
      %v973 = vld [vmem:[%s227 + $0x58] sm:$0xff]
      %v974 = vld [vmem:[%s227 + $0x60] sm:$0xff]
      %v975 = vld [vmem:[%s227 + $0x68] sm:$0xff]
      %v976 = vld [vmem:[%s227 + $0x70] sm:$0xff]
      %v977 = vld [vmem:[%s227 + $0x78] sm:$0xff]
      %v978 = vld [vmem:[%s227 + $0x80] sm:$0xff]
      %v979 = vld [vmem:[%s227 + $0x88] sm:$0xff]
      %v980 = vld [vmem:[%s227 + $0x90] sm:$0xff]
      %v981 = vld [vmem:[%s227 + $0x98] sm:$0xff]
      %v982 = vld [vmem:[%s227 + $0xa0] sm:$0xff]
      %v983 = vld [vmem:[%s227 + $0xa8] sm:$0xff]
      %v984 = vld [vmem:[%s227 + $0xb0] sm:$0xff]
      %v985 = vld [vmem:[%s227 + $0xb8] sm:$0xff]
      %v986 = vld [vmem:[%s227 + $0xc0] sm:$0xff]
      %v987 = vld [vmem:[%s227 + $0xc8] sm:$0xff]
      %v988 = vld [vmem:[%s227 + $0xd0] sm:$0xff]
      %v989 = vld [vmem:[%s227 + $0xd8] sm:$0xff]
      %v990 = vld [vmem:[%s227 + $0xe0] sm:$0xff]
      %v991 = vld [vmem:[%s227 + $0xe8] sm:$0xff]
      %v992 = vld [vmem:[%s227 + $0xf0] sm:$0xff]
      %v993 = vld [vmem:[%s227 + $0xf8] sm:$0xff]
      %v994 = vld [vmem:[%s227 + $0x100] sm:$0xff]
      %v995 = vld [vmem:[%s227 + $0x108] sm:$0xff]
      %v996 = vld [vmem:[%s227 + $0x110] sm:$0xff]
      %v997 = vld [vmem:[%s227 + $0x118] sm:$0xff]
      %v998 = vld [vmem:[%s227 + $0x120] sm:$0xff]
      %v999 = vld [vmem:[%s227 + $0x128] sm:$0xff]
      %v1000 = vld [vmem:[%s227 + $0x130] sm:$0xff]
      %v1001 = vld [vmem:[%s227 + $0x138] sm:$0xff]
      %v1002 = vld [vmem:[%s227 + $0x140] sm:$0xff]
      %v1003 = vld [vmem:[%s227 + $0x148] sm:$0xff]
      %v1004 = vld [vmem:[%s227 + $0x150] sm:$0xff]
      %v1005 = vld [vmem:[%s227 + $0x158] sm:$0xff]
      %v1006 = vld [vmem:[%s227 + $0x160] sm:$0xff]
      %v1007 = vld [vmem:[%s227 + $0x168] sm:$0xff]
      %v1008 = vld [vmem:[%s227 + $0x170] sm:$0xff]
      %v1009 = vld [vmem:[%s227 + $0x178] sm:$0xff]
      %1010 = vmatprep.subr.bf16.mxu0 %v867
      %1011 = vmatpush1.bf16.msra.mxu0 %v866
      %1012 = vmatprep.subr.bf16.mxu0 %v869
      %1013 = vmatpush1.bf16.msra.mxu0 %v868
      %1014 = vmatprep.subr.bf16.mxu0 %v871
      %1015 = vmatpush1.bf16.msra.mxu0 %v870
      %1016 = vmatprep.subr.bf16.mxu0 %v873
      %1017 = vmatpush1.bf16.msra.mxu0 %v872
      %1018 = vmatprep.subr.bf16.mxu0 %v875
      %1019 = vmatpush1.bf16.msra.mxu0 %v874
      %1020 = vmatprep.subr.bf16.mxu0 %v877
      %1021 = vmatpush1.bf16.msra.mxu0 %v876
      %1022 = vmatprep.subr.bf16.mxu0 %v879
      %1023 = vmatpush1.bf16.msra.mxu0 %v878
      %1024 = vmatprep.subr.bf16.mxu0 %v881
      %1025 = vmatpush1.bf16.msra.mxu0 %v880
      %1026 = vmatprep.subr.bf16.mxu0 %v883
      %1027 = vmatpush1.bf16.msra.mxu0 %v882
      %1028 = vmatprep.subr.bf16.mxu0 %v885
      %1029 = vmatpush1.bf16.msra.mxu0 %v884
      %1030 = vmatprep.subr.bf16.mxu0 %v887
      %1031 = vmatpush1.bf16.msra.mxu0 %v886
      %1032 = vmatprep.subr.bf16.mxu0 %v889
      %1033 = vmatpush1.bf16.msra.mxu0 %v888
      %1034 = vmatprep.subr.bf16.mxu0 %v891
      %1035 = vmatpush1.bf16.msra.mxu0 %v890
      %1036 = vmatprep.subr.bf16.mxu0 %v893
      %1037 = vmatpush1.bf16.msra.mxu0 %v892
      %1038 = vmatprep.subr.bf16.mxu0 %v895
      %1039 = vmatpush1.bf16.msra.mxu0 %v894
      %1040 = vmatprep.subr.bf16.mxu0 %v897
      %1041 = vmatpush1.bf16.msra.mxu0 %v896
      %1042 = vmatprep.mubr.bf16.mxu0 %v531
      %1043 = vmatmul.mubr.bf16.gmra.mrb[0].mxu0 %v530
      %v1044 = vpop.f32.mrb[0].mxu0
      %v1045 = vadd.f32 0.0, %v1044
      %v1046 = vpop.f32.mrb[0].mxu0
      %v1047 = vadd.f32 0.0, %v1046
      %v1048 = vpop.f32.mrb[0].mxu0
      %v1049 = vadd.f32 0.0, %v1048
      %v1050 = vpop.f32.mrb[0].mxu0
      %v1051 = vadd.f32 0.0, %v1050
      %1052 = vmatprep.mubr.bf16.mxu0 %v537
      %1053 = vmatmul.mubr.bf16.gmra.mrb[0].mxu0 %v536
      %v1054 = vpop.f32.mrb[0].mxu0
      %v1055 = vadd.f32 0.0, %v1054
      %v1056 = vpop.f32.mrb[0].mxu0
      %v1057 = vadd.f32 0.0, %v1056
      %v1058 = vpop.f32.mrb[0].mxu0
      %v1059 = vadd.f32 0.0, %v1058
      %v1060 = vpop.f32.mrb[0].mxu0
      %v1061 = vadd.f32 0.0, %v1060
      %1062 = vmatprep.mubr.bf16.mxu0 %v543
      %1063 = vmatmul.mubr.bf16.gmra.mrb[0].mxu0 %v542
      %v1064 = vpop.f32.mrb[0].mxu0
      %v1065 = vadd.f32 0.0, %v1064
      %v1066 = vpop.f32.mrb[0].mxu0
      %v1067 = vadd.f32 0.0, %v1066
      %v1068 = vpop.f32.mrb[0].mxu0
      %v1069 = vadd.f32 0.0, %v1068
      %v1070 = vpop.f32.mrb[0].mxu0
      %v1071 = vadd.f32 0.0, %v1070
      %1072 = vmatprep.mubr.bf16.mxu0 %v549
      %1073 = vmatmul.mubr.bf16.gmra.mrb[0].mxu0 %v548
      %v1074 = vpop.f32.mrb[0].mxu0
      %v1075 = vadd.f32 0.0, %v1074
      %v1076 = vpop.f32.mrb[0].mxu0
      %v1077 = vadd.f32 0.0, %v1076
      %v1078 = vpop.f32.mrb[0].mxu0
      %v1079 = vadd.f32 0.0, %v1078
      %v1080 = vpop.f32.mrb[0].mxu0
      %v1081 = vadd.f32 0.0, %v1080
      %1082 = vmatprep.mubr.bf16.mxu0 %v555
      %1083 = vmatmul.mubr.bf16.gmra.mrb[0].mxu0 %v554
      %v1084 = vpop.f32.mrb[0].mxu0
      %v1085 = vadd.f32 0.0, %v1084
      %v1086 = vpop.f32.mrb[0].mxu0
      %v1087 = vadd.f32 0.0, %v1086
      %v1088 = vpop.f32.mrb[0].mxu0
      %v1089 = vadd.f32 0.0, %v1088
      %v1090 = vpop.f32.mrb[0].mxu0
      %v1091 = vadd.f32 0.0, %v1090
      %1092 = vmatprep.mubr.bf16.mxu0 %v561
      %1093 = vmatmul.mubr.bf16.gmra.mrb[0].mxu0 %v560
      %v1094 = vpop.f32.mrb[0].mxu0
      %v1095 = vadd.f32 0.0, %v1094
      %v1096 = vpop.f32.mrb[0].mxu0
      %v1097 = vadd.f32 0.0, %v1096
      %v1098 = vpop.f32.mrb[0].mxu0
      %v1099 = vadd.f32 0.0, %v1098
      %v1100 = vpop.f32.mrb[0].mxu0
      %v1101 = vadd.f32 0.0, %v1100
      %1102 = vmatprep.mubr.bf16.mxu0 %v567
      %1103 = vmatmul.mubr.bf16.gmra.mrb[0].mxu0 %v566
      %v1104 = vpop.f32.mrb[0].mxu0
      %v1105 = vadd.f32 0.0, %v1104
      %v1106 = vpop.f32.mrb[0].mxu0
      %v1107 = vadd.f32 0.0, %v1106
      %v1108 = vpop.f32.mrb[0].mxu0
      %v1109 = vadd.f32 0.0, %v1108
      %v1110 = vpop.f32.mrb[0].mxu0
      %v1111 = vadd.f32 0.0, %v1110
      %1112 = vmatprep.mubr.bf16.mxu0 %v573
      %1113 = vmatmul.mubr.bf16.gmra.mrb[0].mxu0 %v572
      %v1114 = vpop.f32.mrb[0].mxu0
      %v1115 = vadd.f32 0.0, %v1114
      %v1116 = vpop.f32.mrb[0].mxu0
      %v1117 = vadd.f32 0.0, %v1116
      %v1118 = vpop.f32.mrb[0].mxu0
      %v1119 = vadd.f32 0.0, %v1118
      %v1120 = vpop.f32.mrb[0].mxu0
      %v1121 = vadd.f32 0.0, %v1120
      %1122 = vmatprep.mubr.bf16.mxu0 %v579
      %1123 = vmatmul.mubr.bf16.gmra.mrb[0].mxu0 %v578
      %v1124 = vpop.f32.mrb[0].mxu0
      %v1125 = vadd.f32 0.0, %v1124
      %v1126 = vpop.f32.mrb[0].mxu0
      %v1127 = vadd.f32 0.0, %v1126
      %v1128 = vpop.f32.mrb[0].mxu0
      %v1129 = vadd.f32 0.0, %v1128
      %v1130 = vpop.f32.mrb[0].mxu0
      %v1131 = vadd.f32 0.0, %v1130
      %1132 = vmatprep.mubr.bf16.mxu0 %v585
      %1133 = vmatmul.mubr.bf16.gmra.mrb[0].mxu0 %v584
      %v1134 = vpop.f32.mrb[0].mxu0
      %v1135 = vadd.f32 0.0, %v1134
      %v1136 = vpop.f32.mrb[0].mxu0
      %v1137 = vadd.f32 0.0, %v1136
      %v1138 = vpop.f32.mrb[0].mxu0
      %v1139 = vadd.f32 0.0, %v1138
      %v1140 = vpop.f32.mrb[0].mxu0
      %v1141 = vadd.f32 0.0, %v1140
      %1142 = vmatprep.mubr.bf16.mxu0 %v591
      %1143 = vmatmul.mubr.bf16.gmra.mrb[0].mxu0 %v590
      %v1144 = vpop.f32.mrb[0].mxu0
      %v1145 = vadd.f32 0.0, %v1144
      %v1146 = vpop.f32.mrb[0].mxu0
      %v1147 = vadd.f32 0.0, %v1146
      %v1148 = vpop.f32.mrb[0].mxu0
      %v1149 = vadd.f32 0.0, %v1148
      %v1150 = vpop.f32.mrb[0].mxu0
      %v1151 = vadd.f32 0.0, %v1150
      %1152 = vmatprep.mubr.bf16.mxu0 %v597
      %1153 = vmatmul.mubr.bf16.gmra.mrb[0].mxu0 %v596
      %v1154 = vpop.f32.mrb[0].mxu0
      %v1155 = vadd.f32 0.0, %v1154
      %v1156 = vpop.f32.mrb[0].mxu0
      %v1157 = vadd.f32 0.0, %v1156
      %v1158 = vpop.f32.mrb[0].mxu0
      %v1159 = vadd.f32 0.0, %v1158
      %v1160 = vpop.f32.mrb[0].mxu0
      %v1161 = vadd.f32 0.0, %v1160
      %1162 = vmatprep.mubr.bf16.mxu0 %v603
      %1163 = vmatmul.mubr.bf16.gmra.mrb[0].mxu0 %v602
      %v1164 = vpop.f32.mrb[0].mxu0
      %v1165 = vadd.f32 0.0, %v1164
      %v1166 = vpop.f32.mrb[0].mxu0
      %v1167 = vadd.f32 0.0, %v1166
      %v1168 = vpop.f32.mrb[0].mxu0
      %v1169 = vadd.f32 0.0, %v1168
      %v1170 = vpop.f32.mrb[0].mxu0
      %v1171 = vadd.f32 0.0, %v1170
      %1172 = vmatprep.mubr.bf16.mxu0 %v609
      %1173 = vmatmul.mubr.bf16.gmra.mrb[0].mxu0 %v608
      %v1174 = vpop.f32.mrb[0].mxu0
      %v1175 = vadd.f32 0.0, %v1174
      %v1176 = vpop.f32.mrb[0].mxu0
      %v1177 = vadd.f32 0.0, %v1176
      %v1178 = vpop.f32.mrb[0].mxu0
      %v1179 = vadd.f32 0.0, %v1178
      %v1180 = vpop.f32.mrb[0].mxu0
      %v1181 = vadd.f32 0.0, %v1180
      %1182 = vmatprep.mubr.bf16.mxu0 %v615
      %1183 = vmatmul.mubr.bf16.gmra.mrb[0].mxu0 %v614
      %v1184 = vpop.f32.mrb[0].mxu0
      %v1185 = vadd.f32 0.0, %v1184
      %v1186 = vpop.f32.mrb[0].mxu0
      %v1187 = vadd.f32 0.0, %v1186
      %v1188 = vpop.f32.mrb[0].mxu0
      %v1189 = vadd.f32 0.0, %v1188
      %v1190 = vpop.f32.mrb[0].mxu0
      %v1191 = vadd.f32 0.0, %v1190
      %1192 = vmatprep.mubr.bf16.mxu0 %v621
      %1193 = vmatmul.mubr.bf16.gmra.mrb[0].mxu0 %v620
      %v1194 = vpop.f32.mrb[0].mxu0
      %v1195 = vadd.f32 0.0, %v1194
      %v1196 = vpop.f32.mrb[0].mxu0
      %v1197 = vadd.f32 0.0, %v1196
      %v1198 = vpop.f32.mrb[0].mxu0
      %v1199 = vadd.f32 0.0, %v1198
      %v1200 = vpop.f32.mrb[0].mxu0
      %v1201 = vadd.f32 0.0, %v1200
      %1202 = vmatprep.mubr.bf16.mxu0 %v627
      %1203 = vmatmul.mubr.bf16.gmra.mrb[0].mxu0 %v626
      %v1204 = vpop.f32.mrb[0].mxu0
      %v1205 = vadd.f32 0.0, %v1204
      %v1206 = vpop.f32.mrb[0].mxu0
      %v1207 = vadd.f32 0.0, %v1206
      %v1208 = vpop.f32.mrb[0].mxu0
      %v1209 = vadd.f32 0.0, %v1208
      %v1210 = vpop.f32.mrb[0].mxu0
      %v1211 = vadd.f32 0.0, %v1210
      %1212 = vmatprep.mubr.bf16.mxu0 %v633
      %1213 = vmatmul.mubr.bf16.gmra.mrb[0].mxu0 %v632
      %v1214 = vpop.f32.mrb[0].mxu0
      %v1215 = vadd.f32 0.0, %v1214
      %v1216 = vpop.f32.mrb[0].mxu0
      %v1217 = vadd.f32 0.0, %v1216
      %v1218 = vpop.f32.mrb[0].mxu0
      %v1219 = vadd.f32 0.0, %v1218
      %v1220 = vpop.f32.mrb[0].mxu0
      %v1221 = vadd.f32 0.0, %v1220
      %1222 = vmatprep.mubr.bf16.mxu0 %v639
      %1223 = vmatmul.mubr.bf16.gmra.mrb[0].mxu0 %v638
      %v1224 = vpop.f32.mrb[0].mxu0
      %v1225 = vadd.f32 0.0, %v1224
      %v1226 = vpop.f32.mrb[0].mxu0
      %v1227 = vadd.f32 0.0, %v1226
      %v1228 = vpop.f32.mrb[0].mxu0
      %v1229 = vadd.f32 0.0, %v1228
      %v1230 = vpop.f32.mrb[0].mxu0
      %v1231 = vadd.f32 0.0, %v1230
      %1232 = vmatprep.mubr.bf16.mxu0 %v645
      %1233 = vmatmul.mubr.bf16.gmra.mrb[0].mxu0 %v644
      %v1234 = vpop.f32.mrb[0].mxu0
      %v1235 = vadd.f32 0.0, %v1234
      %v1236 = vpop.f32.mrb[0].mxu0
      %v1237 = vadd.f32 0.0, %v1236
      %v1238 = vpop.f32.mrb[0].mxu0
      %v1239 = vadd.f32 0.0, %v1238
      %v1240 = vpop.f32.mrb[0].mxu0
      %v1241 = vadd.f32 0.0, %v1240
      %1242 = vmatprep.mubr.bf16.mxu0 %v651
      %1243 = vmatmul.mubr.bf16.gmra.mrb[0].mxu0 %v650
      %v1244 = vpop.f32.mrb[0].mxu0
      %v1245 = vadd.f32 0.0, %v1244
      %v1246 = vpop.f32.mrb[0].mxu0
      %v1247 = vadd.f32 0.0, %v1246
      %v1248 = vpop.f32.mrb[0].mxu0
      %v1249 = vadd.f32 0.0, %v1248
      %v1250 = vpop.f32.mrb[0].mxu0
      %v1251 = vadd.f32 0.0, %v1250
      %1252 = vmatprep.mubr.bf16.mxu0 %v657
      %1253 = vmatmul.mubr.bf16.gmra.mrb[0].mxu0 %v656
      %v1254 = vpop.f32.mrb[0].mxu0
      %v1255 = vadd.f32 0.0, %v1254
      %v1256 = vpop.f32.mrb[0].mxu0
      %v1257 = vadd.f32 0.0, %v1256
      %v1258 = vpop.f32.mrb[0].mxu0
      %v1259 = vadd.f32 0.0, %v1258
      %v1260 = vpop.f32.mrb[0].mxu0
      %v1261 = vadd.f32 0.0, %v1260
      %1262 = vmatprep.mubr.bf16.mxu0 %v663
      %1263 = vmatmul.mubr.bf16.gmra.mrb[0].mxu0 %v662
      %v1264 = vpop.f32.mrb[0].mxu0
      %v1265 = vadd.f32 0.0, %v1264
      %v1266 = vpop.f32.mrb[0].mxu0
      %v1267 = vadd.f32 0.0, %v1266
      %v1268 = vpop.f32.mrb[0].mxu0
      %v1269 = vadd.f32 0.0, %v1268
      %v1270 = vpop.f32.mrb[0].mxu0
      %v1271 = vadd.f32 0.0, %v1270
      %1272 = vmatprep.mubr.bf16.mxu0 %v669
      %1273 = vmatmul.mubr.bf16.gmra.mrb[0].mxu0 %v668
      %v1274 = vpop.f32.mrb[0].mxu0
      %v1275 = vadd.f32 0.0, %v1274
      %v1276 = vpop.f32.mrb[0].mxu0
      %v1277 = vadd.f32 0.0, %v1276
      %v1278 = vpop.f32.mrb[0].mxu0
      %v1279 = vadd.f32 0.0, %v1278
      %v1280 = vpop.f32.mrb[0].mxu0
      %v1281 = vadd.f32 0.0, %v1280
      %1282 = vdwg.mxu0
      %1283 = vmatprep.subr.bf16.mxu0 %v899
      %1284 = vmatpush1.bf16.msra.mxu0 %v898
      %1285 = vmatprep.subr.bf16.mxu0 %v901
      %1286 = vmatpush1.bf16.msra.mxu0 %v900
      %1287 = vmatprep.subr.bf16.mxu0 %v903
      %1288 = vmatpush1.bf16.msra.mxu0 %v902
      %1289 = vmatprep.subr.bf16.mxu0 %v905
      %1290 = vmatpush1.bf16.msra.mxu0 %v904
      %1291 = vmatprep.subr.bf16.mxu0 %v907
      %1292 = vmatpush1.bf16.msra.mxu0 %v906
      %1293 = vmatprep.subr.bf16.mxu0 %v909
      %1294 = vmatpush1.bf16.msra.mxu0 %v908
      %1295 = vmatprep.subr.bf16.mxu0 %v911
      %1296 = vmatpush1.bf16.msra.mxu0 %v910
      %1297 = vmatprep.subr.bf16.mxu0 %v913
      %1298 = vmatpush1.bf16.msra.mxu0 %v912
      %1299 = vmatprep.subr.bf16.mxu0 %v915
      %1300 = vmatpush1.bf16.msra.mxu0 %v914
      %1301 = vmatprep.subr.bf16.mxu0 %v917
      %1302 = vmatpush1.bf16.msra.mxu0 %v916
      %1303 = vmatprep.subr.bf16.mxu0 %v919
      %1304 = vmatpush1.bf16.msra.mxu0 %v918
      %1305 = vmatprep.subr.bf16.mxu0 %v921
      %1306 = vmatpush1.bf16.msra.mxu0 %v920
      %1307 = vmatprep.subr.bf16.mxu0 %v923
      %1308 = vmatpush1.bf16.msra.mxu0 %v922
      %1309 = vmatprep.subr.bf16.mxu0 %v925
      %1310 = vmatpush1.bf16.msra.mxu0 %v924
      %1311 = vmatprep.subr.bf16.mxu0 %v927
      %1312 = vmatpush1.bf16.msra.mxu0 %v926
      %1313 = vmatprep.subr.bf16.mxu0 %v929
      %1314 = vmatpush1.bf16.msra.mxu0 %v928
      %1315 = vmatprep.mubr.bf16.mxu0 %v533
      %1316 = vmatmul.mubr.bf16.gmra.mrb[0].mxu0 %v532
      %v1317 = vpop.f32.mrb[0].mxu0
      %v1318 = vadd.f32 %v1045, %v1317
      %v1319 = vpop.f32.mrb[0].mxu0
      %v1320 = vadd.f32 %v1047, %v1319
      %v1321 = vpop.f32.mrb[0].mxu0
      %v1322 = vadd.f32 %v1049, %v1321
      %v1323 = vpop.f32.mrb[0].mxu0
      %v1324 = vadd.f32 %v1051, %v1323
      %1325 = vmatprep.mubr.bf16.mxu0 %v539
      %1326 = vmatmul.mubr.bf16.gmra.mrb[0].mxu0 %v538
      %v1327 = vpop.f32.mrb[0].mxu0
      %v1328 = vadd.f32 %v1055, %v1327
      %v1329 = vpop.f32.mrb[0].mxu0
      %v1330 = vadd.f32 %v1057, %v1329
      %v1331 = vpop.f32.mrb[0].mxu0
      %v1332 = vadd.f32 %v1059, %v1331
      %v1333 = vpop.f32.mrb[0].mxu0
      %v1334 = vadd.f32 %v1061, %v1333
      %1335 = vmatprep.mubr.bf16.mxu0 %v545
      %1336 = vmatmul.mubr.bf16.gmra.mrb[0].mxu0 %v544
      %v1337 = vpop.f32.mrb[0].mxu0
      %v1338 = vadd.f32 %v1065, %v1337
      %v1339 = vpop.f32.mrb[0].mxu0
      %v1340 = vadd.f32 %v1067, %v1339
      %v1341 = vpop.f32.mrb[0].mxu0
      %v1342 = vadd.f32 %v1069, %v1341
      %v1343 = vpop.f32.mrb[0].mxu0
      %v1344 = vadd.f32 %v1071, %v1343
      %1345 = vmatprep.mubr.bf16.mxu0 %v551
      %1346 = vmatmul.mubr.bf16.gmra.mrb[0].mxu0 %v550
      %v1347 = vpop.f32.mrb[0].mxu0
      %v1348 = vadd.f32 %v1075, %v1347
      %v1349 = vpop.f32.mrb[0].mxu0
      %v1350 = vadd.f32 %v1077, %v1349
      %v1351 = vpop.f32.mrb[0].mxu0
      %v1352 = vadd.f32 %v1079, %v1351
      %v1353 = vpop.f32.mrb[0].mxu0
      %v1354 = vadd.f32 %v1081, %v1353
      %1355 = vmatprep.mubr.bf16.mxu0 %v557
      %1356 = vmatmul.mubr.bf16.gmra.mrb[0].mxu0 %v556
      %v1357 = vpop.f32.mrb[0].mxu0
      %v1358 = vadd.f32 %v1085, %v1357
      %v1359 = vpop.f32.mrb[0].mxu0
      %v1360 = vadd.f32 %v1087, %v1359
      %v1361 = vpop.f32.mrb[0].mxu0
      %v1362 = vadd.f32 %v1089, %v1361
      %v1363 = vpop.f32.mrb[0].mxu0
      %v1364 = vadd.f32 %v1091, %v1363
      %1365 = vmatprep.mubr.bf16.mxu0 %v563
      %1366 = vmatmul.mubr.bf16.gmra.mrb[0].mxu0 %v562
      %v1367 = vpop.f32.mrb[0].mxu0
      %v1368 = vadd.f32 %v1095, %v1367
      %v1369 = vpop.f32.mrb[0].mxu0
      %v1370 = vadd.f32 %v1097, %v1369
      %v1371 = vpop.f32.mrb[0].mxu0
      %v1372 = vadd.f32 %v1099, %v1371
      %v1373 = vpop.f32.mrb[0].mxu0
      %v1374 = vadd.f32 %v1101, %v1373
      %1375 = vmatprep.mubr.bf16.mxu0 %v569
      %1376 = vmatmul.mubr.bf16.gmra.mrb[0].mxu0 %v568
      %v1377 = vpop.f32.mrb[0].mxu0
      %v1378 = vadd.f32 %v1105, %v1377
      %v1379 = vpop.f32.mrb[0].mxu0
      %v1380 = vadd.f32 %v1107, %v1379
      %v1381 = vpop.f32.mrb[0].mxu0
      %v1382 = vadd.f32 %v1109, %v1381
      %v1383 = vpop.f32.mrb[0].mxu0
      %v1384 = vadd.f32 %v1111, %v1383
      %1385 = vmatprep.mubr.bf16.mxu0 %v575
      %1386 = vmatmul.mubr.bf16.gmra.mrb[0].mxu0 %v574
      %v1387 = vpop.f32.mrb[0].mxu0
      %v1388 = vadd.f32 %v1115, %v1387
      %v1389 = vpop.f32.mrb[0].mxu0
      %v1390 = vadd.f32 %v1117, %v1389
      %v1391 = vpop.f32.mrb[0].mxu0
      %v1392 = vadd.f32 %v1119, %v1391
      %v1393 = vpop.f32.mrb[0].mxu0
      %v1394 = vadd.f32 %v1121, %v1393
      %1395 = vmatprep.mubr.bf16.mxu0 %v581
      %1396 = vmatmul.mubr.bf16.gmra.mrb[0].mxu0 %v580
      %v1397 = vpop.f32.mrb[0].mxu0
      %v1398 = vadd.f32 %v1125, %v1397
      %v1399 = vpop.f32.mrb[0].mxu0
      %v1400 = vadd.f32 %v1127, %v1399
      %v1401 = vpop.f32.mrb[0].mxu0
      %v1402 = vadd.f32 %v1129, %v1401
      %v1403 = vpop.f32.mrb[0].mxu0
      %v1404 = vadd.f32 %v1131, %v1403
      %1405 = vmatprep.mubr.bf16.mxu0 %v587
      %1406 = vmatmul.mubr.bf16.gmra.mrb[0].mxu0 %v586
      %v1407 = vpop.f32.mrb[0].mxu0
      %v1408 = vadd.f32 %v1135, %v1407
      %v1409 = vpop.f32.mrb[0].mxu0
      %v1410 = vadd.f32 %v1137, %v1409
      %v1411 = vpop.f32.mrb[0].mxu0
      %v1412 = vadd.f32 %v1139, %v1411
      %v1413 = vpop.f32.mrb[0].mxu0
      %v1414 = vadd.f32 %v1141, %v1413
      %1415 = vmatprep.mubr.bf16.mxu0 %v593
      %1416 = vmatmul.mubr.bf16.gmra.mrb[0].mxu0 %v592
      %v1417 = vpop.f32.mrb[0].mxu0
      %v1418 = vadd.f32 %v1145, %v1417
      %v1419 = vpop.f32.mrb[0].mxu0
      %v1420 = vadd.f32 %v1147, %v1419
      %v1421 = vpop.f32.mrb[0].mxu0
      %v1422 = vadd.f32 %v1149, %v1421
      %v1423 = vpop.f32.mrb[0].mxu0
      %v1424 = vadd.f32 %v1151, %v1423
      %1425 = vmatprep.mubr.bf16.mxu0 %v599
      %1426 = vmatmul.mubr.bf16.gmra.mrb[0].mxu0 %v598
      %v1427 = vpop.f32.mrb[0].mxu0
      %v1428 = vadd.f32 %v1155, %v1427
      %v1429 = vpop.f32.mrb[0].mxu0
      %v1430 = vadd.f32 %v1157, %v1429
      %v1431 = vpop.f32.mrb[0].mxu0
      %v1432 = vadd.f32 %v1159, %v1431
      %v1433 = vpop.f32.mrb[0].mxu0
      %v1434 = vadd.f32 %v1161, %v1433
      %1435 = vmatprep.mubr.bf16.mxu0 %v605
      %1436 = vmatmul.mubr.bf16.gmra.mrb[0].mxu0 %v604
      %v1437 = vpop.f32.mrb[0].mxu0
      %v1438 = vadd.f32 %v1165, %v1437
      %v1439 = vpop.f32.mrb[0].mxu0
      %v1440 = vadd.f32 %v1167, %v1439
      %v1441 = vpop.f32.mrb[0].mxu0
      %v1442 = vadd.f32 %v1169, %v1441
      %v1443 = vpop.f32.mrb[0].mxu0
      %v1444 = vadd.f32 %v1171, %v1443
      %1445 = vmatprep.mubr.bf16.mxu0 %v611
      %1446 = vmatmul.mubr.bf16.gmra.mrb[0].mxu0 %v610
      %v1447 = vpop.f32.mrb[0].mxu0
      %v1448 = vadd.f32 %v1175, %v1447
      %v1449 = vpop.f32.mrb[0].mxu0
      %v1450 = vadd.f32 %v1177, %v1449
      %v1451 = vpop.f32.mrb[0].mxu0
      %v1452 = vadd.f32 %v1179, %v1451
      %v1453 = vpop.f32.mrb[0].mxu0
      %v1454 = vadd.f32 %v1181, %v1453
      %1455 = vmatprep.mubr.bf16.mxu0 %v617
      %1456 = vmatmul.mubr.bf16.gmra.mrb[0].mxu0 %v616
      %v1457 = vpop.f32.mrb[0].mxu0
      %v1458 = vadd.f32 %v1185, %v1457
      %v1459 = vpop.f32.mrb[0].mxu0
      %v1460 = vadd.f32 %v1187, %v1459
      %v1461 = vpop.f32.mrb[0].mxu0
      %v1462 = vadd.f32 %v1189, %v1461
      %v1463 = vpop.f32.mrb[0].mxu0
      %v1464 = vadd.f32 %v1191, %v1463
      %1465 = vmatprep.mubr.bf16.mxu0 %v623
      %1466 = vmatmul.mubr.bf16.gmra.mrb[0].mxu0 %v622
      %v1467 = vpop.f32.mrb[0].mxu0
      %v1468 = vadd.f32 %v1195, %v1467
      %v1469 = vpop.f32.mrb[0].mxu0
      %v1470 = vadd.f32 %v1197, %v1469
      %v1471 = vpop.f32.mrb[0].mxu0
      %v1472 = vadd.f32 %v1199, %v1471
      %v1473 = vpop.f32.mrb[0].mxu0
      %v1474 = vadd.f32 %v1201, %v1473
      %1475 = vmatprep.mubr.bf16.mxu0 %v629
      %1476 = vmatmul.mubr.bf16.gmra.mrb[0].mxu0 %v628
      %v1477 = vpop.f32.mrb[0].mxu0
      %v1478 = vadd.f32 %v1205, %v1477
      %v1479 = vpop.f32.mrb[0].mxu0
      %v1480 = vadd.f32 %v1207, %v1479
      %v1481 = vpop.f32.mrb[0].mxu0
      %v1482 = vadd.f32 %v1209, %v1481
      %v1483 = vpop.f32.mrb[0].mxu0
      %v1484 = vadd.f32 %v1211, %v1483
      %1485 = vmatprep.mubr.bf16.mxu0 %v635
      %1486 = vmatmul.mubr.bf16.gmra.mrb[0].mxu0 %v634
      %v1487 = vpop.f32.mrb[0].mxu0
      %v1488 = vadd.f32 %v1215, %v1487
      %v1489 = vpop.f32.mrb[0].mxu0
      %v1490 = vadd.f32 %v1217, %v1489
      %v1491 = vpop.f32.mrb[0].mxu0
      %v1492 = vadd.f32 %v1219, %v1491
      %v1493 = vpop.f32.mrb[0].mxu0
      %v1494 = vadd.f32 %v1221, %v1493
      %1495 = vmatprep.mubr.bf16.mxu0 %v641
      %1496 = vmatmul.mubr.bf16.gmra.mrb[0].mxu0 %v640
      %v1497 = vpop.f32.mrb[0].mxu0
      %v1498 = vadd.f32 %v1225, %v1497
      %v1499 = vpop.f32.mrb[0].mxu0
      %v1500 = vadd.f32 %v1227, %v1499
      %v1501 = vpop.f32.mrb[0].mxu0
      %v1502 = vadd.f32 %v1229, %v1501
      %v1503 = vpop.f32.mrb[0].mxu0
      %v1504 = vadd.f32 %v1231, %v1503
      %1505 = vmatprep.mubr.bf16.mxu0 %v647
      %1506 = vmatmul.mubr.bf16.gmra.mrb[0].mxu0 %v646
      %v1507 = vpop.f32.mrb[0].mxu0
      %v1508 = vadd.f32 %v1235, %v1507
      %v1509 = vpop.f32.mrb[0].mxu0
      %v1510 = vadd.f32 %v1237, %v1509
      %v1511 = vpop.f32.mrb[0].mxu0
      %v1512 = vadd.f32 %v1239, %v1511
      %v1513 = vpop.f32.mrb[0].mxu0
      %v1514 = vadd.f32 %v1241, %v1513
      %1515 = vmatprep.mubr.bf16.mxu0 %v653
      %1516 = vmatmul.mubr.bf16.gmra.mrb[0].mxu0 %v652
      %v1517 = vpop.f32.mrb[0].mxu0
      %v1518 = vadd.f32 %v1245, %v1517
      %v1519 = vpop.f32.mrb[0].mxu0
      %v1520 = vadd.f32 %v1247, %v1519
      %v1521 = vpop.f32.mrb[0].mxu0
      %v1522 = vadd.f32 %v1249, %v1521
      %v1523 = vpop.f32.mrb[0].mxu0
      %v1524 = vadd.f32 %v1251, %v1523
      %1525 = vmatprep.mubr.bf16.mxu0 %v659
      %1526 = vmatmul.mubr.bf16.gmra.mrb[0].mxu0 %v658
      %v1527 = vpop.f32.mrb[0].mxu0
      %v1528 = vadd.f32 %v1255, %v1527
      %v1529 = vpop.f32.mrb[0].mxu0
      %v1530 = vadd.f32 %v1257, %v1529
      %v1531 = vpop.f32.mrb[0].mxu0
      %v1532 = vadd.f32 %v1259, %v1531
      %v1533 = vpop.f32.mrb[0].mxu0
      %v1534 = vadd.f32 %v1261, %v1533
      %1535 = vmatprep.mubr.bf16.mxu0 %v665
      %1536 = vmatmul.mubr.bf16.gmra.mrb[0].mxu0 %v664
      %v1537 = vpop.f32.mrb[0].mxu0
      %v1538 = vadd.f32 %v1265, %v1537
      %v1539 = vpop.f32.mrb[0].mxu0
      %v1540 = vadd.f32 %v1267, %v1539
      %v1541 = vpop.f32.mrb[0].mxu0
      %v1542 = vadd.f32 %v1269, %v1541
      %v1543 = vpop.f32.mrb[0].mxu0
      %v1544 = vadd.f32 %v1271, %v1543
      %1545 = vmatprep.mubr.bf16.mxu0 %v671
      %1546 = vmatmul.mubr.bf16.gmra.mrb[0].mxu0 %v670
      %v1547 = vpop.f32.mrb[0].mxu0
      %v1548 = vadd.f32 %v1275, %v1547
      %v1549 = vpop.f32.mrb[0].mxu0
      %v1550 = vadd.f32 %v1277, %v1549
      %v1551 = vpop.f32.mrb[0].mxu0
      %v1552 = vadd.f32 %v1279, %v1551
      %v1553 = vpop.f32.mrb[0].mxu0
      %v1554 = vadd.f32 %v1281, %v1553
      %1555 = vdwg.mxu0
      %1556 = vmatprep.subr.bf16.mxu0 %v931
      %1557 = vmatpush1.bf16.msra.mxu0 %v930
      %1558 = vmatprep.subr.bf16.mxu0 %v933
      %1559 = vmatpush1.bf16.msra.mxu0 %v932
      %1560 = vmatprep.subr.bf16.mxu0 %v935
      %1561 = vmatpush1.bf16.msra.mxu0 %v934
      %1562 = vmatprep.subr.bf16.mxu0 %v937
      %1563 = vmatpush1.bf16.msra.mxu0 %v936
      %1564 = vmatprep.subr.bf16.mxu0 %v939
      %1565 = vmatpush1.bf16.msra.mxu0 %v938
      %1566 = vmatprep.subr.bf16.mxu0 %v941
      %1567 = vmatpush1.bf16.msra.mxu0 %v940
      %1568 = vmatprep.subr.bf16.mxu0 %v943
      %1569 = vmatpush1.bf16.msra.mxu0 %v942
      %1570 = vmatprep.subr.bf16.mxu0 %v945
      %1571 = vmatpush1.bf16.msra.mxu0 %v944
      %1572 = vmatprep.subr.bf16.mxu0 %v947
      %1573 = vmatpush1.bf16.msra.mxu0 %v946
      %1574 = vmatprep.subr.bf16.mxu0 %v949
      %1575 = vmatpush1.bf16.msra.mxu0 %v948
      %1576 = vmatprep.subr.bf16.mxu0 %v951
      %1577 = vmatpush1.bf16.msra.mxu0 %v950
      %1578 = vmatprep.subr.bf16.mxu0 %v953
      %1579 = vmatpush1.bf16.msra.mxu0 %v952
      %1580 = vmatprep.subr.bf16.mxu0 %v955
      %1581 = vmatpush1.bf16.msra.mxu0 %v954
      %1582 = vmatprep.subr.bf16.mxu0 %v957
      %1583 = vmatpush1.bf16.msra.mxu0 %v956
      %1584 = vmatprep.subr.bf16.mxu0 %v959
      %1585 = vmatpush1.bf16.msra.mxu0 %v958
      %1586 = vmatprep.subr.bf16.mxu0 %v961
      %1587 = vmatpush1.bf16.msra.mxu0 %v960
      %1588 = vmatprep.mubr.bf16.mxu0 %v535
      %1589 = vmatmul.mubr.bf16.gmra.mrb[0].mxu0 %v534
      %v1590 = vpop.f32.mrb[0].mxu0
      %v1591 = vadd.f32 %v1318, %v1590
      %v1592 = vpop.f32.mrb[0].mxu0
      %v1593 = vadd.f32 %v1320, %v1592
      %v1594 = vpop.f32.mrb[0].mxu0
      %v1595 = vadd.f32 %v1322, %v1594
      %v1596 = vpop.f32.mrb[0].mxu0
      %v1597 = vadd.f32 %v1324, %v1596
      %1598 = vmatprep.mubr.bf16.mxu0 %v541
      %1599 = vmatmul.mubr.bf16.gmra.mrb[0].mxu0 %v540
      %v1600 = vpop.f32.mrb[0].mxu0
      %v1601 = vadd.f32 %v1328, %v1600
      %v1602 = vpop.f32.mrb[0].mxu0
      %v1603 = vadd.f32 %v1330, %v1602
      %v1604 = vpop.f32.mrb[0].mxu0
      %v1605 = vadd.f32 %v1332, %v1604
      %v1606 = vpop.f32.mrb[0].mxu0
      %v1607 = vadd.f32 %v1334, %v1606
      %1608 = vmatprep.mubr.bf16.mxu0 %v547
      %1609 = vmatmul.mubr.bf16.gmra.mrb[0].mxu0 %v546
      %v1610 = vpop.f32.mrb[0].mxu0
      %v1611 = vadd.f32 %v1338, %v1610
      %v1612 = vpop.f32.mrb[0].mxu0
      %v1613 = vadd.f32 %v1340, %v1612
      %v1614 = vpop.f32.mrb[0].mxu0
      %v1615 = vadd.f32 %v1342, %v1614
      %v1616 = vpop.f32.mrb[0].mxu0
      %v1617 = vadd.f32 %v1344, %v1616
      %1618 = vmatprep.mubr.bf16.mxu0 %v553
      %1619 = vmatmul.mubr.bf16.gmra.mrb[0].mxu0 %v552
      %v1620 = vpop.f32.mrb[0].mxu0
      %v1621 = vadd.f32 %v1348, %v1620
      %v1622 = vpop.f32.mrb[0].mxu0
      %v1623 = vadd.f32 %v1350, %v1622
      %v1624 = vpop.f32.mrb[0].mxu0
      %v1625 = vadd.f32 %v1352, %v1624
      %v1626 = vpop.f32.mrb[0].mxu0
      %v1627 = vadd.f32 %v1354, %v1626
      %1628 = vmatprep.mubr.bf16.mxu0 %v559
      %1629 = vmatmul.mubr.bf16.gmra.mrb[0].mxu0 %v558
      %v1630 = vpop.f32.mrb[0].mxu0
      %v1631 = vadd.f32 %v1358, %v1630
      %v1632 = vpop.f32.mrb[0].mxu0
      %v1633 = vadd.f32 %v1360, %v1632
      %v1634 = vpop.f32.mrb[0].mxu0
      %v1635 = vadd.f32 %v1362, %v1634
      %v1636 = vpop.f32.mrb[0].mxu0
      %v1637 = vadd.f32 %v1364, %v1636
      %1638 = vmatprep.mubr.bf16.mxu0 %v565
      %1639 = vmatmul.mubr.bf16.gmra.mrb[0].mxu0 %v564
      %v1640 = vpop.f32.mrb[0].mxu0
      %v1641 = vadd.f32 %v1368, %v1640
      %v1642 = vpop.f32.mrb[0].mxu0
      %v1643 = vadd.f32 %v1370, %v1642
      %v1644 = vpop.f32.mrb[0].mxu0
      %v1645 = vadd.f32 %v1372, %v1644
      %v1646 = vpop.f32.mrb[0].mxu0
      %v1647 = vadd.f32 %v1374, %v1646
      %1648 = vmatprep.mubr.bf16.mxu0 %v571
      %1649 = vmatmul.mubr.bf16.gmra.mrb[0].mxu0 %v570
      %v1650 = vpop.f32.mrb[0].mxu0
      %v1651 = vadd.f32 %v1378, %v1650
      %v1652 = vpop.f32.mrb[0].mxu0
      %v1653 = vadd.f32 %v1380, %v1652
      %v1654 = vpop.f32.mrb[0].mxu0
      %v1655 = vadd.f32 %v1382, %v1654
      %v1656 = vpop.f32.mrb[0].mxu0
      %v1657 = vadd.f32 %v1384, %v1656
      %1658 = vmatprep.mubr.bf16.mxu0 %v577
      %1659 = vmatmul.mubr.bf16.gmra.mrb[0].mxu0 %v576
      %v1660 = vpop.f32.mrb[0].mxu0
      %v1661 = vadd.f32 %v1388, %v1660
      %v1662 = vpop.f32.mrb[0].mxu0
      %v1663 = vadd.f32 %v1390, %v1662
      %v1664 = vpop.f32.mrb[0].mxu0
      %v1665 = vadd.f32 %v1392, %v1664
      %v1666 = vpop.f32.mrb[0].mxu0
      %v1667 = vadd.f32 %v1394, %v1666
      %1668 = vmatprep.mubr.bf16.mxu0 %v583
      %1669 = vmatmul.mubr.bf16.gmra.mrb[0].mxu0 %v582
      %v1670 = vpop.f32.mrb[0].mxu0
      %v1671 = vadd.f32 %v1398, %v1670
      %v1672 = vpop.f32.mrb[0].mxu0
      %v1673 = vadd.f32 %v1400, %v1672
      %v1674 = vpop.f32.mrb[0].mxu0
      %v1675 = vadd.f32 %v1402, %v1674
      %v1676 = vpop.f32.mrb[0].mxu0
      %v1677 = vadd.f32 %v1404, %v1676
      %1678 = vmatprep.mubr.bf16.mxu0 %v589
      %1679 = vmatmul.mubr.bf16.gmra.mrb[0].mxu0 %v588
      %v1680 = vpop.f32.mrb[0].mxu0
      %v1681 = vadd.f32 %v1408, %v1680
      %v1682 = vpop.f32.mrb[0].mxu0
      %v1683 = vadd.f32 %v1410, %v1682
      %v1684 = vpop.f32.mrb[0].mxu0
      %v1685 = vadd.f32 %v1412, %v1684
      %v1686 = vpop.f32.mrb[0].mxu0
      %v1687 = vadd.f32 %v1414, %v1686
      %1688 = vmatprep.mubr.bf16.mxu0 %v595
      %1689 = vmatmul.mubr.bf16.gmra.mrb[0].mxu0 %v594
      %v1690 = vpop.f32.mrb[0].mxu0
      %v1691 = vadd.f32 %v1418, %v1690
      %v1692 = vpop.f32.mrb[0].mxu0
      %v1693 = vadd.f32 %v1420, %v1692
      %v1694 = vpop.f32.mrb[0].mxu0
      %v1695 = vadd.f32 %v1422, %v1694
      %v1696 = vpop.f32.mrb[0].mxu0
      %v1697 = vadd.f32 %v1424, %v1696
      %1698 = vmatprep.mubr.bf16.mxu0 %v601
      %1699 = vmatmul.mubr.bf16.gmra.mrb[0].mxu0 %v600
      %v1700 = vpop.f32.mrb[0].mxu0
      %v1701 = vadd.f32 %v1428, %v1700
      %v1702 = vpop.f32.mrb[0].mxu0
      %v1703 = vadd.f32 %v1430, %v1702
      %v1704 = vpop.f32.mrb[0].mxu0
      %v1705 = vadd.f32 %v1432, %v1704
      %v1706 = vpop.f32.mrb[0].mxu0
      %v1707 = vadd.f32 %v1434, %v1706
      %1708 = vmatprep.mubr.bf16.mxu0 %v607
      %1709 = vmatmul.mubr.bf16.gmra.mrb[0].mxu0 %v606
      %v1710 = vpop.f32.mrb[0].mxu0
      %v1711 = vadd.f32 %v1438, %v1710
      %v1712 = vpop.f32.mrb[0].mxu0
      %v1713 = vadd.f32 %v1440, %v1712
      %v1714 = vpop.f32.mrb[0].mxu0
      %v1715 = vadd.f32 %v1442, %v1714
      %v1716 = vpop.f32.mrb[0].mxu0
      %v1717 = vadd.f32 %v1444, %v1716
      %1718 = vmatprep.mubr.bf16.mxu0 %v613
      %1719 = vmatmul.mubr.bf16.gmra.mrb[0].mxu0 %v612
      %v1720 = vpop.f32.mrb[0].mxu0
      %v1721 = vadd.f32 %v1448, %v1720
      %v1722 = vpop.f32.mrb[0].mxu0
      %v1723 = vadd.f32 %v1450, %v1722
      %v1724 = vpop.f32.mrb[0].mxu0
      %v1725 = vadd.f32 %v1452, %v1724
      %v1726 = vpop.f32.mrb[0].mxu0
      %v1727 = vadd.f32 %v1454, %v1726
      %1728 = vmatprep.mubr.bf16.mxu0 %v619
      %1729 = vmatmul.mubr.bf16.gmra.mrb[0].mxu0 %v618
      %v1730 = vpop.f32.mrb[0].mxu0
      %v1731 = vadd.f32 %v1458, %v1730
      %v1732 = vpop.f32.mrb[0].mxu0
      %v1733 = vadd.f32 %v1460, %v1732
      %v1734 = vpop.f32.mrb[0].mxu0
      %v1735 = vadd.f32 %v1462, %v1734
      %v1736 = vpop.f32.mrb[0].mxu0
      %v1737 = vadd.f32 %v1464, %v1736
      %1738 = vmatprep.mubr.bf16.mxu0 %v625
      %1739 = vmatmul.mubr.bf16.gmra.mrb[0].mxu0 %v624
      %v1740 = vpop.f32.mrb[0].mxu0
      %v1741 = vadd.f32 %v1468, %v1740
      %v1742 = vpop.f32.mrb[0].mxu0
      %v1743 = vadd.f32 %v1470, %v1742
      %v1744 = vpop.f32.mrb[0].mxu0
      %v1745 = vadd.f32 %v1472, %v1744
      %v1746 = vpop.f32.mrb[0].mxu0
      %v1747 = vadd.f32 %v1474, %v1746
      %1748 = vmatprep.mubr.bf16.mxu0 %v631
      %1749 = vmatmul.mubr.bf16.gmra.mrb[0].mxu0 %v630
      %v1750 = vpop.f32.mrb[0].mxu0
      %v1751 = vadd.f32 %v1478, %v1750
      %v1752 = vpop.f32.mrb[0].mxu0
      %v1753 = vadd.f32 %v1480, %v1752
      %v1754 = vpop.f32.mrb[0].mxu0
      %v1755 = vadd.f32 %v1482, %v1754
      %v1756 = vpop.f32.mrb[0].mxu0
      %v1757 = vadd.f32 %v1484, %v1756
      %1758 = vmatprep.mubr.bf16.mxu0 %v637
      %1759 = vmatmul.mubr.bf16.gmra.mrb[0].mxu0 %v636
      %v1760 = vpop.f32.mrb[0].mxu0
      %v1761 = vadd.f32 %v1488, %v1760
      %v1762 = vpop.f32.mrb[0].mxu0
      %v1763 = vadd.f32 %v1490, %v1762
      %v1764 = vpop.f32.mrb[0].mxu0
      %v1765 = vadd.f32 %v1492, %v1764
      %v1766 = vpop.f32.mrb[0].mxu0
      %v1767 = vadd.f32 %v1494, %v1766
      %1768 = vmatprep.mubr.bf16.mxu0 %v643
      %1769 = vmatmul.mubr.bf16.gmra.mrb[0].mxu0 %v642
      %v1770 = vpop.f32.mrb[0].mxu0
      %v1771 = vadd.f32 %v1498, %v1770
      %v1772 = vpop.f32.mrb[0].mxu0
      %v1773 = vadd.f32 %v1500, %v1772
      %v1774 = vpop.f32.mrb[0].mxu0
      %v1775 = vadd.f32 %v1502, %v1774
      %v1776 = vpop.f32.mrb[0].mxu0
      %v1777 = vadd.f32 %v1504, %v1776
      %1778 = vmatprep.mubr.bf16.mxu0 %v649
      %1779 = vmatmul.mubr.bf16.gmra.mrb[0].mxu0 %v648
      %v1780 = vpop.f32.mrb[0].mxu0
      %v1781 = vadd.f32 %v1508, %v1780
      %v1782 = vpop.f32.mrb[0].mxu0
      %v1783 = vadd.f32 %v1510, %v1782
      %v1784 = vpop.f32.mrb[0].mxu0
      %v1785 = vadd.f32 %v1512, %v1784
      %v1786 = vpop.f32.mrb[0].mxu0
      %v1787 = vadd.f32 %v1514, %v1786
      %1788 = vmatprep.mubr.bf16.mxu0 %v655
      %1789 = vmatmul.mubr.bf16.gmra.mrb[0].mxu0 %v654
      %v1790 = vpop.f32.mrb[0].mxu0
      %v1791 = vadd.f32 %v1518, %v1790
      %v1792 = vpop.f32.mrb[0].mxu0
      %v1793 = vadd.f32 %v1520, %v1792
      %v1794 = vpop.f32.mrb[0].mxu0
      %v1795 = vadd.f32 %v1522, %v1794
      %v1796 = vpop.f32.mrb[0].mxu0
      %v1797 = vadd.f32 %v1524, %v1796
      %1798 = vmatprep.mubr.bf16.mxu0 %v661
      %1799 = vmatmul.mubr.bf16.gmra.mrb[0].mxu0 %v660
      %v1800 = vpop.f32.mrb[0].mxu0
      %v1801 = vadd.f32 %v1528, %v1800
      %v1802 = vpop.f32.mrb[0].mxu0
      %v1803 = vadd.f32 %v1530, %v1802
      %v1804 = vpop.f32.mrb[0].mxu0
      %v1805 = vadd.f32 %v1532, %v1804
      %v1806 = vpop.f32.mrb[0].mxu0
      %v1807 = vadd.f32 %v1534, %v1806
      %1808 = vmatprep.mubr.bf16.mxu0 %v667
      %1809 = vmatmul.mubr.bf16.gmra.mrb[0].mxu0 %v666
      %v1810 = vpop.f32.mrb[0].mxu0
      %v1811 = vadd.f32 %v1538, %v1810
      %v1812 = vpop.f32.mrb[0].mxu0
      %v1813 = vadd.f32 %v1540, %v1812
      %v1814 = vpop.f32.mrb[0].mxu0
      %v1815 = vadd.f32 %v1542, %v1814
      %v1816 = vpop.f32.mrb[0].mxu0
      %v1817 = vadd.f32 %v1544, %v1816
      %1818 = vmatprep.mubr.bf16.mxu0 %v673
      %1819 = vmatmul.mubr.bf16.gmra.mrb[0].mxu0 %v672
      %v1820 = vpop.f32.mrb[0].mxu0
      %v1821 = vadd.f32 %v1548, %v1820
      %v1822 = vpop.f32.mrb[0].mxu0
      %v1823 = vadd.f32 %v1550, %v1822
      %v1824 = vpop.f32.mrb[0].mxu0
      %v1825 = vadd.f32 %v1552, %v1824
      %v1826 = vpop.f32.mrb[0].mxu0
      %v1827 = vadd.f32 %v1554, %v1826
      %1828 = vdwg.mxu0
      %1830 = vset.pattern.permute.xlu0 0
      %1831 = vperm.xlu0 %1830, %v962
      %v1832 = vpop.permute.xlu0 %1831
      %1835 = vset.pattern.permute.xlu0 0
      %1836 = vperm.xlu0 %1835, %v963
      %v1837 = vpop.permute.xlu0 %1836
      %1840 = vset.pattern.permute.xlu0 0
      %1841 = vperm.xlu0 %1840, %v964
      %v1842 = vpop.permute.xlu0 %1841
      %1845 = vset.pattern.permute.xlu0 0
      %1846 = vperm.xlu0 %1845, %v965
      %v1847 = vpop.permute.xlu0 %1846
      %1850 = vset.pattern.permute.xlu0 0
      %1851 = vperm.xlu0 %1850, %v966
      %v1852 = vpop.permute.xlu0 %1851
      %1855 = vset.pattern.permute.xlu0 0
      %1856 = vperm.xlu0 %1855, %v967
      %v1857 = vpop.permute.xlu0 %1856
      %1860 = vset.pattern.permute.xlu0 0
      %1861 = vperm.xlu0 %1860, %v968
      %v1862 = vpop.permute.xlu0 %1861
      %1865 = vset.pattern.permute.xlu0 0
      %1866 = vperm.xlu0 %1865, %v969
      %v1867 = vpop.permute.xlu0 %1866
      %1870 = vset.pattern.permute.xlu0 0
      %1871 = vperm.xlu0 %1870, %v970
      %v1872 = vpop.permute.xlu0 %1871
      %1875 = vset.pattern.permute.xlu0 0
      %1876 = vperm.xlu0 %1875, %v971
      %v1877 = vpop.permute.xlu0 %1876
      %1880 = vset.pattern.permute.xlu0 0
      %1881 = vperm.xlu0 %1880, %v972
      %v1882 = vpop.permute.xlu0 %1881
      %1885 = vset.pattern.permute.xlu0 0
      %1886 = vperm.xlu0 %1885, %v973
      %v1887 = vpop.permute.xlu0 %1886
      %1890 = vset.pattern.permute.xlu0 0
      %1891 = vperm.xlu0 %1890, %v974
      %v1892 = vpop.permute.xlu0 %1891
      %1895 = vset.pattern.permute.xlu0 0
      %1896 = vperm.xlu0 %1895, %v975
      %v1897 = vpop.permute.xlu0 %1896
      %1900 = vset.pattern.permute.xlu0 0
      %1901 = vperm.xlu0 %1900, %v976
      %v1902 = vpop.permute.xlu0 %1901
      %1905 = vset.pattern.permute.xlu0 0
      %1906 = vperm.xlu0 %1905, %v977
      %v1907 = vpop.permute.xlu0 %1906
      %1910 = vset.pattern.permute.xlu0 0
      %1911 = vperm.xlu0 %1910, %v978
      %v1912 = vpop.permute.xlu0 %1911
      %1915 = vset.pattern.permute.xlu0 0
      %1916 = vperm.xlu0 %1915, %v979
      %v1917 = vpop.permute.xlu0 %1916
      %1920 = vset.pattern.permute.xlu0 0
      %1921 = vperm.xlu0 %1920, %v980
      %v1922 = vpop.permute.xlu0 %1921
      %1925 = vset.pattern.permute.xlu0 0
      %1926 = vperm.xlu0 %1925, %v981
      %v1927 = vpop.permute.xlu0 %1926
      %1930 = vset.pattern.permute.xlu0 0
      %1931 = vperm.xlu0 %1930, %v982
      %v1932 = vpop.permute.xlu0 %1931
      %1935 = vset.pattern.permute.xlu0 0
      %1936 = vperm.xlu0 %1935, %v983
      %v1937 = vpop.permute.xlu0 %1936
      %1940 = vset.pattern.permute.xlu0 0
      %1941 = vperm.xlu0 %1940, %v984
      %v1942 = vpop.permute.xlu0 %1941
      %1945 = vset.pattern.permute.xlu0 0
      %1946 = vperm.xlu0 %1945, %v985
      %v1947 = vpop.permute.xlu0 %1946
      %1950 = vset.pattern.permute.xlu0 0
      %1951 = vperm.xlu0 %1950, %v986
      %v1952 = vpop.permute.xlu0 %1951
      %1955 = vset.pattern.permute.xlu0 0
      %1956 = vperm.xlu0 %1955, %v987
      %v1957 = vpop.permute.xlu0 %1956
      %1960 = vset.pattern.permute.xlu0 0
      %1961 = vperm.xlu0 %1960, %v988
      %v1962 = vpop.permute.xlu0 %1961
      %1965 = vset.pattern.permute.xlu0 0
      %1966 = vperm.xlu0 %1965, %v989
      %v1967 = vpop.permute.xlu0 %1966
      %1970 = vset.pattern.permute.xlu0 0
      %1971 = vperm.xlu0 %1970, %v990
      %v1972 = vpop.permute.xlu0 %1971
      %1975 = vset.pattern.permute.xlu0 0
      %1976 = vperm.xlu0 %1975, %v991
      %v1977 = vpop.permute.xlu0 %1976
      %1980 = vset.pattern.permute.xlu0 0
      %1981 = vperm.xlu0 %1980, %v992
      %v1982 = vpop.permute.xlu0 %1981
      %1985 = vset.pattern.permute.xlu0 0
      %1986 = vperm.xlu0 %1985, %v993
      %v1987 = vpop.permute.xlu0 %1986
      %1990 = vset.pattern.permute.xlu0 0
      %1991 = vperm.xlu0 %1990, %v994
      %v1992 = vpop.permute.xlu0 %1991
      %1995 = vset.pattern.permute.xlu0 0
      %1996 = vperm.xlu0 %1995, %v995
      %v1997 = vpop.permute.xlu0 %1996
      %2000 = vset.pattern.permute.xlu0 0
      %2001 = vperm.xlu0 %2000, %v996
      %v2002 = vpop.permute.xlu0 %2001
      %2005 = vset.pattern.permute.xlu0 0
      %2006 = vperm.xlu0 %2005, %v997
      %v2007 = vpop.permute.xlu0 %2006
      %2010 = vset.pattern.permute.xlu0 0
      %2011 = vperm.xlu0 %2010, %v998
      %v2012 = vpop.permute.xlu0 %2011
      %2015 = vset.pattern.permute.xlu0 0
      %2016 = vperm.xlu0 %2015, %v999
      %v2017 = vpop.permute.xlu0 %2016
      %2020 = vset.pattern.permute.xlu0 0
      %2021 = vperm.xlu0 %2020, %v1000
      %v2022 = vpop.permute.xlu0 %2021
      %2025 = vset.pattern.permute.xlu0 0
      %2026 = vperm.xlu0 %2025, %v1001
      %v2027 = vpop.permute.xlu0 %2026
      %2030 = vset.pattern.permute.xlu0 0
      %2031 = vperm.xlu0 %2030, %v1002
      %v2032 = vpop.permute.xlu0 %2031
      %2035 = vset.pattern.permute.xlu0 0
      %2036 = vperm.xlu0 %2035, %v1003
      %v2037 = vpop.permute.xlu0 %2036
      %2040 = vset.pattern.permute.xlu0 0
      %2041 = vperm.xlu0 %2040, %v1004
      %v2042 = vpop.permute.xlu0 %2041
      %2045 = vset.pattern.permute.xlu0 0
      %2046 = vperm.xlu0 %2045, %v1005
      %v2047 = vpop.permute.xlu0 %2046
      %2050 = vset.pattern.permute.xlu0 0
      %2051 = vperm.xlu0 %2050, %v1006
      %v2052 = vpop.permute.xlu0 %2051
      %2055 = vset.pattern.permute.xlu0 0
      %2056 = vperm.xlu0 %2055, %v1007
      %v2057 = vpop.permute.xlu0 %2056
      %2060 = vset.pattern.permute.xlu0 0
      %2061 = vperm.xlu0 %2060, %v1008
      %v2062 = vpop.permute.xlu0 %2061
      %2065 = vset.pattern.permute.xlu0 0
      %2066 = vperm.xlu0 %2065, %v1009
      %v2067 = vpop.permute.xlu0 %2066
      %v2069 = vadd.f32 %v1591, %v1832
      %v2070 = vadd.f32 %v1593, %v1832
      %v2071 = vadd.f32 %v1595, %v1837
      %v2072 = vadd.f32 %v1597, %v1837
      %v2073 = vadd.f32 %v1601, %v1842
      %v2074 = vadd.f32 %v1603, %v1842
      %v2075 = vadd.f32 %v1605, %v1847
      %v2076 = vadd.f32 %v1607, %v1847
      %v2077 = vadd.f32 %v1611, %v1852
      %v2078 = vadd.f32 %v1613, %v1852
      %v2079 = vadd.f32 %v1615, %v1857
      %v2080 = vadd.f32 %v1617, %v1857
      %v2081 = vadd.f32 %v1621, %v1862
      %v2082 = vadd.f32 %v1623, %v1862
      %v2083 = vadd.f32 %v1625, %v1867
      %v2084 = vadd.f32 %v1627, %v1867
      %v2085 = vadd.f32 %v1631, %v1872
      %v2086 = vadd.f32 %v1633, %v1872
      %v2087 = vadd.f32 %v1635, %v1877
      %v2088 = vadd.f32 %v1637, %v1877
      %v2089 = vadd.f32 %v1641, %v1882
      %v2090 = vadd.f32 %v1643, %v1882
      %v2091 = vadd.f32 %v1645, %v1887
      %v2092 = vadd.f32 %v1647, %v1887
      %v2093 = vadd.f32 %v1651, %v1892
      %v2094 = vadd.f32 %v1653, %v1892
      %v2095 = vadd.f32 %v1655, %v1897
      %v2096 = vadd.f32 %v1657, %v1897
      %v2097 = vadd.f32 %v1661, %v1902
      %v2098 = vadd.f32 %v1663, %v1902
      %v2099 = vadd.f32 %v1665, %v1907
      %v2100 = vadd.f32 %v1667, %v1907
      %v2101 = vadd.f32 %v1671, %v1912
      %v2102 = vadd.f32 %v1673, %v1912
      %v2103 = vadd.f32 %v1675, %v1917
      %v2104 = vadd.f32 %v1677, %v1917
      %v2105 = vadd.f32 %v1681, %v1922
      %v2106 = vadd.f32 %v1683, %v1922
      %v2107 = vadd.f32 %v1685, %v1927
      %v2108 = vadd.f32 %v1687, %v1927
      %v2109 = vadd.f32 %v1691, %v1932
      %v2110 = vadd.f32 %v1693, %v1932
      %v2111 = vadd.f32 %v1695, %v1937
      %v2112 = vadd.f32 %v1697, %v1937
      %v2113 = vadd.f32 %v1701, %v1942
      %v2114 = vadd.f32 %v1703, %v1942
      %v2115 = vadd.f32 %v1705, %v1947
      %v2116 = vadd.f32 %v1707, %v1947
      %v2117 = vadd.f32 %v1711, %v1952
      %v2118 = vadd.f32 %v1713, %v1952
      %v2119 = vadd.f32 %v1715, %v1957
      %v2120 = vadd.f32 %v1717, %v1957
      %v2121 = vadd.f32 %v1721, %v1962
      %v2122 = vadd.f32 %v1723, %v1962
      %v2123 = vadd.f32 %v1725, %v1967
      %v2124 = vadd.f32 %v1727, %v1967
      %v2125 = vadd.f32 %v1731, %v1972
      %v2126 = vadd.f32 %v1733, %v1972
      %v2127 = vadd.f32 %v1735, %v1977
      %v2128 = vadd.f32 %v1737, %v1977
      %v2129 = vadd.f32 %v1741, %v1982
      %v2130 = vadd.f32 %v1743, %v1982
      %v2131 = vadd.f32 %v1745, %v1987
      %v2132 = vadd.f32 %v1747, %v1987
      %v2133 = vadd.f32 %v1751, %v1992
      %v2134 = vadd.f32 %v1753, %v1992
      %v2135 = vadd.f32 %v1755, %v1997
      %v2136 = vadd.f32 %v1757, %v1997
      %v2137 = vadd.f32 %v1761, %v2002
      %v2138 = vadd.f32 %v1763, %v2002
      %v2139 = vadd.f32 %v1765, %v2007
      %v2140 = vadd.f32 %v1767, %v2007
      %v2141 = vadd.f32 %v1771, %v2012
      %v2142 = vadd.f32 %v1773, %v2012
      %v2143 = vadd.f32 %v1775, %v2017
      %v2144 = vadd.f32 %v1777, %v2017
      %v2145 = vadd.f32 %v1781, %v2022
      %v2146 = vadd.f32 %v1783, %v2022
      %v2147 = vadd.f32 %v1785, %v2027
      %v2148 = vadd.f32 %v1787, %v2027
      %v2149 = vadd.f32 %v1791, %v2032
      %v2150 = vadd.f32 %v1793, %v2032
      %v2151 = vadd.f32 %v1795, %v2037
      %v2152 = vadd.f32 %v1797, %v2037
      %v2153 = vadd.f32 %v1801, %v2042
      %v2154 = vadd.f32 %v1803, %v2042
      %v2155 = vadd.f32 %v1805, %v2047
      %v2156 = vadd.f32 %v1807, %v2047
      %v2157 = vadd.f32 %v1811, %v2052
      %v2158 = vadd.f32 %v1813, %v2052
      %v2159 = vadd.f32 %v1815, %v2057
      %v2160 = vadd.f32 %v1817, %v2057
      %v2161 = vadd.f32 %v1821, %v2062
      %v2162 = vadd.f32 %v1823, %v2062
      %v2163 = vadd.f32 %v1825, %v2067
      %v2164 = vadd.f32 %v1827, %v2067
      %2165 = vst [vmem:[%s234] sm:$0xff] %v2069
      %vm2166 = vcmask 556032
      %2167 = vst.msk [vmem:[%s234 + $0x8] sm:$0xff] %vm2166, %v2070
      %2168 = vst [vmem:[%s234 + $0x10] sm:$0xff] %v2071
      %2169 = vst.msk [vmem:[%s234 + $0x18] sm:$0xff] %vm2166, %v2072
      %2170 = vst [vmem:[%s234 + $0x20] sm:$0xff] %v2073
      %2171 = vst.msk [vmem:[%s234 + $0x28] sm:$0xff] %vm2166, %v2074
      %2172 = vst [vmem:[%s234 + $0x30] sm:$0xff] %v2075
      %2173 = vst.msk [vmem:[%s234 + $0x38] sm:$0xff] %vm2166, %v2076
      %2174 = vst [vmem:[%s234 + $0x40] sm:$0xff] %v2077
      %2175 = vst.msk [vmem:[%s234 + $0x48] sm:$0xff] %vm2166, %v2078
      %2176 = vst [vmem:[%s234 + $0x50] sm:$0xff] %v2079
      %2177 = vst.msk [vmem:[%s234 + $0x58] sm:$0xff] %vm2166, %v2080
      %2178 = vst [vmem:[%s234 + $0x60] sm:$0xff] %v2081
      %2179 = vst.msk [vmem:[%s234 + $0x68] sm:$0xff] %vm2166, %v2082
      %2180 = vst [vmem:[%s234 + $0x70] sm:$0xff] %v2083
      %2181 = vst.msk [vmem:[%s234 + $0x78] sm:$0xff] %vm2166, %v2084
      %2182 = vst [vmem:[%s234 + $0x80] sm:$0xff] %v2085
      %2183 = vst.msk [vmem:[%s234 + $0x88] sm:$0xff] %vm2166, %v2086
      %2184 = vst [vmem:[%s234 + $0x90] sm:$0xff] %v2087
      %2185 = vst.msk [vmem:[%s234 + $0x98] sm:$0xff] %vm2166, %v2088
      %2186 = vst [vmem:[%s234 + $0xa0] sm:$0xff] %v2089
      %2187 = vst.msk [vmem:[%s234 + $0xa8] sm:$0xff] %vm2166, %v2090
      %2188 = vst [vmem:[%s234 + $0xb0] sm:$0xff] %v2091
      %2189 = vst.msk [vmem:[%s234 + $0xb8] sm:$0xff] %vm2166, %v2092
      %2190 = vst [vmem:[%s234 + $0xc0] sm:$0xff] %v2093
      %2191 = vst.msk [vmem:[%s234 + $0xc8] sm:$0xff] %vm2166, %v2094
      %2192 = vst [vmem:[%s234 + $0xd0] sm:$0xff] %v2095
      %2193 = vst.msk [vmem:[%s234 + $0xd8] sm:$0xff] %vm2166, %v2096
      %2194 = vst [vmem:[%s234 + $0xe0] sm:$0xff] %v2097
      %2195 = vst.msk [vmem:[%s234 + $0xe8] sm:$0xff] %vm2166, %v2098
      %2196 = vst [vmem:[%s234 + $0xf0] sm:$0xff] %v2099
      %2197 = vst.msk [vmem:[%s234 + $0xf8] sm:$0xff] %vm2166, %v2100
      %2198 = vst [vmem:[%s234 + $0x100] sm:$0xff] %v2101
      %2199 = vst.msk [vmem:[%s234 + $0x108] sm:$0xff] %vm2166, %v2102
      %2200 = vst [vmem:[%s234 + $0x110] sm:$0xff] %v2103
      %2201 = vst.msk [vmem:[%s234 + $0x118] sm:$0xff] %vm2166, %v2104
      %2202 = vst [vmem:[%s234 + $0x120] sm:$0xff] %v2105
      %2203 = vst.msk [vmem:[%s234 + $0x128] sm:$0xff] %vm2166, %v2106
      %2204 = vst [vmem:[%s234 + $0x130] sm:$0xff] %v2107
      %2205 = vst.msk [vmem:[%s234 + $0x138] sm:$0xff] %vm2166, %v2108
      %2206 = vst [vmem:[%s234 + $0x140] sm:$0xff] %v2109
      %2207 = vst.msk [vmem:[%s234 + $0x148] sm:$0xff] %vm2166, %v2110
      %2208 = vst [vmem:[%s234 + $0x150] sm:$0xff] %v2111
      %2209 = vst.msk [vmem:[%s234 + $0x158] sm:$0xff] %vm2166, %v2112
      %2210 = vst [vmem:[%s234 + $0x160] sm:$0xff] %v2113
      %2211 = vst.msk [vmem:[%s234 + $0x168] sm:$0xff] %vm2166, %v2114
      %2212 = vst [vmem:[%s234 + $0x170] sm:$0xff] %v2115
      %2213 = vst.msk [vmem:[%s234 + $0x178] sm:$0xff] %vm2166, %v2116
      %2214 = vst [vmem:[%s234 + $0x180] sm:$0xff] %v2117
      %2215 = vst.msk [vmem:[%s234 + $0x188] sm:$0xff] %vm2166, %v2118
      %2216 = vst [vmem:[%s234 + $0x190] sm:$0xff] %v2119
      %2217 = vst.msk [vmem:[%s234 + $0x198] sm:$0xff] %vm2166, %v2120
      %2218 = vst [vmem:[%s234 + $0x1a0] sm:$0xff] %v2121
      %2219 = vst.msk [vmem:[%s234 + $0x1a8] sm:$0xff] %vm2166, %v2122
      %2220 = vst [vmem:[%s234 + $0x1b0] sm:$0xff] %v2123
      %2221 = vst.msk [vmem:[%s234 + $0x1b8] sm:$0xff] %vm2166, %v2124
      %2222 = vst [vmem:[%s234 + $0x1c0] sm:$0xff] %v2125
      %2223 = vst.msk [vmem:[%s234 + $0x1c8] sm:$0xff] %vm2166, %v2126
      %2224 = vst [vmem:[%s234 + $0x1d0] sm:$0xff] %v2127
      %2225 = vst.msk [vmem:[%s234 + $0x1d8] sm:$0xff] %vm2166, %v2128
      %2226 = vst [vmem:[%s234 + $0x1e0] sm:$0xff] %v2129
      %2227 = vst.msk [vmem:[%s234 + $0x1e8] sm:$0xff] %vm2166, %v2130
      %2228 = vst [vmem:[%s234 + $0x1f0] sm:$0xff] %v2131
      %2229 = vst.msk [vmem:[%s234 + $0x1f8] sm:$0xff] %vm2166, %v2132
      %2230 = vst [vmem:[%s234 + $0x200] sm:$0xff] %v2133
      %2231 = vst.msk [vmem:[%s234 + $0x208] sm:$0xff] %vm2166, %v2134
      %2232 = vst [vmem:[%s234 + $0x210] sm:$0xff] %v2135
      %2233 = vst.msk [vmem:[%s234 + $0x218] sm:$0xff] %vm2166, %v2136
      %2234 = vst [vmem:[%s234 + $0x220] sm:$0xff] %v2137
      %2235 = vst.msk [vmem:[%s234 + $0x228] sm:$0xff] %vm2166, %v2138
      %2236 = vst [vmem:[%s234 + $0x230] sm:$0xff] %v2139
      %2237 = vst.msk [vmem:[%s234 + $0x238] sm:$0xff] %vm2166, %v2140
      %2238 = vst [vmem:[%s234 + $0x240] sm:$0xff] %v2141
      %2239 = vst.msk [vmem:[%s234 + $0x248] sm:$0xff] %vm2166, %v2142
      %2240 = vst [vmem:[%s234 + $0x250] sm:$0xff] %v2143
      %2241 = vst.msk [vmem:[%s234 + $0x258] sm:$0xff] %vm2166, %v2144
      %2242 = vst [vmem:[%s234 + $0x260] sm:$0xff] %v2145
      %2243 = vst.msk [vmem:[%s234 + $0x268] sm:$0xff] %vm2166, %v2146
      %2244 = vst [vmem:[%s234 + $0x270] sm:$0xff] %v2147
      %2245 = vst.msk [vmem:[%s234 + $0x278] sm:$0xff] %vm2166, %v2148
      %2246 = vst [vmem:[%s234 + $0x280] sm:$0xff] %v2149
      %2247 = vst.msk [vmem:[%s234 + $0x288] sm:$0xff] %vm2166, %v2150
      %2248 = vst [vmem:[%s234 + $0x290] sm:$0xff] %v2151
      %2249 = vst.msk [vmem:[%s234 + $0x298] sm:$0xff] %vm2166, %v2152
      %2250 = vst [vmem:[%s234 + $0x2a0] sm:$0xff] %v2153
      %2251 = vst.msk [vmem:[%s234 + $0x2a8] sm:$0xff] %vm2166, %v2154
      %2252 = vst [vmem:[%s234 + $0x2b0] sm:$0xff] %v2155
      %2253 = vst.msk [vmem:[%s234 + $0x2b8] sm:$0xff] %vm2166, %v2156
      %2254 = vst [vmem:[%s234 + $0x2c0] sm:$0xff] %v2157
      %2255 = vst.msk [vmem:[%s234 + $0x2c8] sm:$0xff] %vm2166, %v2158
      %2256 = vst [vmem:[%s234 + $0x2d0] sm:$0xff] %v2159
      %2257 = vst.msk [vmem:[%s234 + $0x2d8] sm:$0xff] %vm2166, %v2160
      %2258 = vst [vmem:[%s234 + $0x2e0] sm:$0xff] %v2161
      %2259 = vst.msk [vmem:[%s234 + $0x2e8] sm:$0xff] %vm2166, %v2162
      %2260 = vst [vmem:[%s234 + $0x2f0] sm:$0xff] %v2163
      %2261 = vst.msk [vmem:[%s234 + $0x2f8] sm:$0xff] %vm2166, %v2164
      %v2262 = vsel %vm2166, %v1593, 0.0
      %v2263 = vadd.f32 %v1591, %v2262
      %2264 = vadd.xlane.f32.xlu0 %v2263
      %v2265 = vpop.xlane.xlu0 %2264
      %v2266 = vsel %vm2166, %v1597, 0.0
      %v2267 = vadd.f32 %v1595, %v2266
      %2268 = vadd.xlane.f32.xlu0 %v2267
      %v2269 = vpop.xlane.xlu0 %2268
      %v2270 = vsel %vm2166, %v1603, 0.0
      %v2271 = vadd.f32 %v1601, %v2270
      %2272 = vadd.xlane.f32.xlu0 %v2271
      %v2273 = vpop.xlane.xlu0 %2272
      %v2274 = vsel %vm2166, %v1607, 0.0
      %v2275 = vadd.f32 %v1605, %v2274
      %2276 = vadd.xlane.f32.xlu0 %v2275
      %v2277 = vpop.xlane.xlu0 %2276
      %v2278 = vsel %vm2166, %v1613, 0.0
      %v2279 = vadd.f32 %v1611, %v2278
      %2280 = vadd.xlane.f32.xlu0 %v2279
      %v2281 = vpop.xlane.xlu0 %2280
      %v2282 = vsel %vm2166, %v1617, 0.0
      %v2283 = vadd.f32 %v1615, %v2282
      %2284 = vadd.xlane.f32.xlu0 %v2283
      %v2285 = vpop.xlane.xlu0 %2284
      %v2286 = vsel %vm2166, %v1623, 0.0
      %v2287 = vadd.f32 %v1621, %v2286
      %2288 = vadd.xlane.f32.xlu0 %v2287
      %v2289 = vpop.xlane.xlu0 %2288
      %v2290 = vsel %vm2166, %v1627, 0.0
      %v2291 = vadd.f32 %v1625, %v2290
      %2292 = vadd.xlane.f32.xlu0 %v2291
      %v2293 = vpop.xlane.xlu0 %2292
      %v2294 = vsel %vm2166, %v1633, 0.0
      %v2295 = vadd.f32 %v1631, %v2294
      %2296 = vadd.xlane.f32.xlu0 %v2295
      %v2297 = vpop.xlane.xlu0 %2296
      %v2298 = vsel %vm2166, %v1637, 0.0
      %v2299 = vadd.f32 %v1635, %v2298
      %2300 = vadd.xlane.f32.xlu0 %v2299
      %v2301 = vpop.xlane.xlu0 %2300
      %v2302 = vsel %vm2166, %v1643, 0.0
      %v2303 = vadd.f32 %v1641, %v2302
      %2304 = vadd.xlane.f32.xlu0 %v2303
      %v2305 = vpop.xlane.xlu0 %2304
      %v2306 = vsel %vm2166, %v1647, 0.0
      %v2307 = vadd.f32 %v1645, %v2306
      %2308 = vadd.xlane.f32.xlu0 %v2307
      %v2309 = vpop.xlane.xlu0 %2308
      %v2310 = vsel %vm2166, %v1653, 0.0
      %v2311 = vadd.f32 %v1651, %v2310
      %2312 = vadd.xlane.f32.xlu0 %v2311
      %v2313 = vpop.xlane.xlu0 %2312
      %v2314 = vsel %vm2166, %v1657, 0.0
      %v2315 = vadd.f32 %v1655, %v2314
      %2316 = vadd.xlane.f32.xlu0 %v2315
      %v2317 = vpop.xlane.xlu0 %2316
      %v2318 = vsel %vm2166, %v1663, 0.0
      %v2319 = vadd.f32 %v1661, %v2318
      %2320 = vadd.xlane.f32.xlu0 %v2319
      %v2321 = vpop.xlane.xlu0 %2320
      %v2322 = vsel %vm2166, %v1667, 0.0
      %v2323 = vadd.f32 %v1665, %v2322
      %2324 = vadd.xlane.f32.xlu0 %v2323
      %v2325 = vpop.xlane.xlu0 %2324
      %v2326 = vsel %vm2166, %v1673, 0.0
      %v2327 = vadd.f32 %v1671, %v2326
      %2328 = vadd.xlane.f32.xlu0 %v2327
      %v2329 = vpop.xlane.xlu0 %2328
      %v2330 = vsel %vm2166, %v1677, 0.0
      %v2331 = vadd.f32 %v1675, %v2330
      %2332 = vadd.xlane.f32.xlu0 %v2331
      %v2333 = vpop.xlane.xlu0 %2332
      %v2334 = vsel %vm2166, %v1683, 0.0
      %v2335 = vadd.f32 %v1681, %v2334
      %2336 = vadd.xlane.f32.xlu0 %v2335
      %v2337 = vpop.xlane.xlu0 %2336
      %v2338 = vsel %vm2166, %v1687, 0.0
      %v2339 = vadd.f32 %v1685, %v2338
      %2340 = vadd.xlane.f32.xlu0 %v2339
      %v2341 = vpop.xlane.xlu0 %2340
      %v2342 = vsel %vm2166, %v1693, 0.0
      %v2343 = vadd.f32 %v1691, %v2342
      %2344 = vadd.xlane.f32.xlu0 %v2343
      %v2345 = vpop.xlane.xlu0 %2344
      %v2346 = vsel %vm2166, %v1697, 0.0
      %v2347 = vadd.f32 %v1695, %v2346
      %2348 = vadd.xlane.f32.xlu0 %v2347
      %v2349 = vpop.xlane.xlu0 %2348
      %v2350 = vsel %vm2166, %v1703, 0.0
      %v2351 = vadd.f32 %v1701, %v2350
      %2352 = vadd.xlane.f32.xlu0 %v2351
      %v2353 = vpop.xlane.xlu0 %2352
      %v2354 = vsel %vm2166, %v1707, 0.0
      %v2355 = vadd.f32 %v1705, %v2354
      %2356 = vadd.xlane.f32.xlu0 %v2355
      %v2357 = vpop.xlane.xlu0 %2356
      %v2358 = vsel %vm2166, %v1713, 0.0
      %v2359 = vadd.f32 %v1711, %v2358
      %2360 = vadd.xlane.f32.xlu0 %v2359
      %v2361 = vpop.xlane.xlu0 %2360
      %v2362 = vsel %vm2166, %v1717, 0.0
      %v2363 = vadd.f32 %v1715, %v2362
      %2364 = vadd.xlane.f32.xlu0 %v2363
      %v2365 = vpop.xlane.xlu0 %2364
      %v2366 = vsel %vm2166, %v1723, 0.0
      %v2367 = vadd.f32 %v1721, %v2366
      %2368 = vadd.xlane.f32.xlu0 %v2367
      %v2369 = vpop.xlane.xlu0 %2368
      %v2370 = vsel %vm2166, %v1727, 0.0
      %v2371 = vadd.f32 %v1725, %v2370
      %2372 = vadd.xlane.f32.xlu0 %v2371
      %v2373 = vpop.xlane.xlu0 %2372
      %v2374 = vsel %vm2166, %v1733, 0.0
      %v2375 = vadd.f32 %v1731, %v2374
      %2376 = vadd.xlane.f32.xlu0 %v2375
      %v2377 = vpop.xlane.xlu0 %2376
      %v2378 = vsel %vm2166, %v1737, 0.0
      %v2379 = vadd.f32 %v1735, %v2378
      %2380 = vadd.xlane.f32.xlu0 %v2379
      %v2381 = vpop.xlane.xlu0 %2380
      %v2382 = vsel %vm2166, %v1743, 0.0
      %v2383 = vadd.f32 %v1741, %v2382
      %2384 = vadd.xlane.f32.xlu0 %v2383
      %v2385 = vpop.xlane.xlu0 %2384
      %v2386 = vsel %vm2166, %v1747, 0.0
      %v2387 = vadd.f32 %v1745, %v2386
      %2388 = vadd.xlane.f32.xlu0 %v2387
      %v2389 = vpop.xlane.xlu0 %2388
      %v2390 = vsel %vm2166, %v1753, 0.0
      %v2391 = vadd.f32 %v1751, %v2390
      %2392 = vadd.xlane.f32.xlu0 %v2391
      %v2393 = vpop.xlane.xlu0 %2392
      %v2394 = vsel %vm2166, %v1757, 0.0
      %v2395 = vadd.f32 %v1755, %v2394
      %2396 = vadd.xlane.f32.xlu0 %v2395
      %v2397 = vpop.xlane.xlu0 %2396
      %v2398 = vsel %vm2166, %v1763, 0.0
      %v2399 = vadd.f32 %v1761, %v2398
      %2400 = vadd.xlane.f32.xlu0 %v2399
      %v2401 = vpop.xlane.xlu0 %2400
      %v2402 = vsel %vm2166, %v1767, 0.0
      %v2403 = vadd.f32 %v1765, %v2402
      %2404 = vadd.xlane.f32.xlu0 %v2403
      %v2405 = vpop.xlane.xlu0 %2404
      %v2406 = vsel %vm2166, %v1773, 0.0
      %v2407 = vadd.f32 %v1771, %v2406
      %2408 = vadd.xlane.f32.xlu0 %v2407
      %v2409 = vpop.xlane.xlu0 %2408
      %v2410 = vsel %vm2166, %v1777, 0.0
      %v2411 = vadd.f32 %v1775, %v2410
      %2412 = vadd.xlane.f32.xlu0 %v2411
      %v2413 = vpop.xlane.xlu0 %2412
      %v2414 = vsel %vm2166, %v1783, 0.0
      %v2415 = vadd.f32 %v1781, %v2414
      %2416 = vadd.xlane.f32.xlu0 %v2415
      %v2417 = vpop.xlane.xlu0 %2416
      %v2418 = vsel %vm2166, %v1787, 0.0
      %v2419 = vadd.f32 %v1785, %v2418
      %2420 = vadd.xlane.f32.xlu0 %v2419
      %v2421 = vpop.xlane.xlu0 %2420
      %v2422 = vsel %vm2166, %v1793, 0.0
      %v2423 = vadd.f32 %v1791, %v2422
      %2424 = vadd.xlane.f32.xlu0 %v2423
      %v2425 = vpop.xlane.xlu0 %2424
      %v2426 = vsel %vm2166, %v1797, 0.0
      %v2427 = vadd.f32 %v1795, %v2426
      %2428 = vadd.xlane.f32.xlu0 %v2427
      %v2429 = vpop.xlane.xlu0 %2428
      %v2430 = vsel %vm2166, %v1803, 0.0
      %v2431 = vadd.f32 %v1801, %v2430
      %2432 = vadd.xlane.f32.xlu0 %v2431
      %v2433 = vpop.xlane.xlu0 %2432
      %v2434 = vsel %vm2166, %v1807, 0.0
      %v2435 = vadd.f32 %v1805, %v2434
      %2436 = vadd.xlane.f32.xlu0 %v2435
      %v2437 = vpop.xlane.xlu0 %2436
      %v2438 = vsel %vm2166, %v1813, 0.0
      %v2439 = vadd.f32 %v1811, %v2438
      %2440 = vadd.xlane.f32.xlu0 %v2439
      %v2441 = vpop.xlane.xlu0 %2440
      %v2442 = vsel %vm2166, %v1817, 0.0
      %v2443 = vadd.f32 %v1815, %v2442
      %2444 = vadd.xlane.f32.xlu0 %v2443
      %v2445 = vpop.xlane.xlu0 %2444
      %v2446 = vsel %vm2166, %v1823, 0.0
      %v2447 = vadd.f32 %v1821, %v2446
      %2448 = vadd.xlane.f32.xlu0 %v2447
      %v2449 = vpop.xlane.xlu0 %2448
      %v2450 = vsel %vm2166, %v1827, 0.0
      %v2451 = vadd.f32 %v1825, %v2450
      %2452 = vadd.xlane.f32.xlu0 %v2451
      %v2453 = vpop.xlane.xlu0 %2452
      %v2454 = vmul.f32 %v2265, 0.0051020407
      %v2455 = vmul.f32 %v2269, 0.0051020407
      %v2456 = vmul.f32 %v2273, 0.0051020407
      %v2457 = vmul.f32 %v2277, 0.0051020407
      %v2458 = vmul.f32 %v2281, 0.0051020407
      %v2459 = vmul.f32 %v2285, 0.0051020407
      %v2460 = vmul.f32 %v2289, 0.0051020407
      %v2461 = vmul.f32 %v2293, 0.0051020407
      %v2462 = vmul.f32 %v2297, 0.0051020407
      %v2463 = vmul.f32 %v2301, 0.0051020407
      %v2464 = vmul.f32 %v2305, 0.0051020407
      %v2465 = vmul.f32 %v2309, 0.0051020407
      %v2466 = vmul.f32 %v2313, 0.0051020407
      %v2467 = vmul.f32 %v2317, 0.0051020407
      %v2468 = vmul.f32 %v2321, 0.0051020407
      %v2469 = vmul.f32 %v2325, 0.0051020407
      %v2470 = vmul.f32 %v2329, 0.0051020407
      %v2471 = vmul.f32 %v2333, 0.0051020407
      %v2472 = vmul.f32 %v2337, 0.0051020407
      %v2473 = vmul.f32 %v2341, 0.0051020407
      %v2474 = vmul.f32 %v2345, 0.0051020407
      %v2475 = vmul.f32 %v2349, 0.0051020407
      %v2476 = vmul.f32 %v2353, 0.0051020407
      %v2477 = vmul.f32 %v2357, 0.0051020407
      %v2478 = vmul.f32 %v2361, 0.0051020407
      %v2479 = vmul.f32 %v2365, 0.0051020407
      %v2480 = vmul.f32 %v2369, 0.0051020407
      %v2481 = vmul.f32 %v2373, 0.0051020407
      %v2482 = vmul.f32 %v2377, 0.0051020407
      %v2483 = vmul.f32 %v2381, 0.0051020407
      %v2484 = vmul.f32 %v2385, 0.0051020407
      %v2485 = vmul.f32 %v2389, 0.0051020407
      %v2486 = vmul.f32 %v2393, 0.0051020407
      %v2487 = vmul.f32 %v2397, 0.0051020407
      %v2488 = vmul.f32 %v2401, 0.0051020407
      %v2489 = vmul.f32 %v2405, 0.0051020407
      %v2490 = vmul.f32 %v2409, 0.0051020407
      %v2491 = vmul.f32 %v2413, 0.0051020407
      %v2492 = vmul.f32 %v2417, 0.0051020407
      %v2493 = vmul.f32 %v2421, 0.0051020407
      %v2494 = vmul.f32 %v2425, 0.0051020407
      %v2495 = vmul.f32 %v2429, 0.0051020407
      %v2496 = vmul.f32 %v2433, 0.0051020407
      %v2497 = vmul.f32 %v2437, 0.0051020407
      %v2498 = vmul.f32 %v2441, 0.0051020407
      %v2499 = vmul.f32 %v2445, 0.0051020407
      %v2500 = vmul.f32 %v2449, 0.0051020407
      %v2501 = vmul.f32 %v2453, 0.0051020407
      %v2502 = vadd.f32 %v2454, %v962
      %v2503 = vadd.f32 %v2455, %v963
      %v2504 = vadd.f32 %v2456, %v964
      %v2505 = vadd.f32 %v2457, %v965
      %v2506 = vadd.f32 %v2458, %v966
      %v2507 = vadd.f32 %v2459, %v967
      %v2508 = vadd.f32 %v2460, %v968
      %v2509 = vadd.f32 %v2461, %v969
      %v2510 = vadd.f32 %v2462, %v970
      %v2511 = vadd.f32 %v2463, %v971
      %v2512 = vadd.f32 %v2464, %v972
      %v2513 = vadd.f32 %v2465, %v973
      %v2514 = vadd.f32 %v2466, %v974
      %v2515 = vadd.f32 %v2467, %v975
      %v2516 = vadd.f32 %v2468, %v976
      %v2517 = vadd.f32 %v2469, %v977
      %v2518 = vadd.f32 %v2470, %v978
      %v2519 = vadd.f32 %v2471, %v979
      %v2520 = vadd.f32 %v2472, %v980
      %v2521 = vadd.f32 %v2473, %v981
      %v2522 = vadd.f32 %v2474, %v982
      %v2523 = vadd.f32 %v2475, %v983
      %v2524 = vadd.f32 %v2476, %v984
      %v2525 = vadd.f32 %v2477, %v985
      %v2526 = vadd.f32 %v2478, %v986
      %v2527 = vadd.f32 %v2479, %v987
      %v2528 = vadd.f32 %v2480, %v988
      %v2529 = vadd.f32 %v2481, %v989
      %v2530 = vadd.f32 %v2482, %v990
      %v2531 = vadd.f32 %v2483, %v991
      %v2532 = vadd.f32 %v2484, %v992
      %v2533 = vadd.f32 %v2485, %v993
      %v2534 = vadd.f32 %v2486, %v994
      %v2535 = vadd.f32 %v2487, %v995
      %v2536 = vadd.f32 %v2488, %v996
      %v2537 = vadd.f32 %v2489, %v997
      %v2538 = vadd.f32 %v2490, %v998
      %v2539 = vadd.f32 %v2491, %v999
      %v2540 = vadd.f32 %v2492, %v1000
      %v2541 = vadd.f32 %v2493, %v1001
      %v2542 = vadd.f32 %v2494, %v1002
      %v2543 = vadd.f32 %v2495, %v1003
      %v2544 = vadd.f32 %v2496, %v1004
      %v2545 = vadd.f32 %v2497, %v1005
      %v2546 = vadd.f32 %v2498, %v1006
      %v2547 = vadd.f32 %v2499, %v1007
      %v2548 = vadd.f32 %v2500, %v1008
      %v2549 = vadd.f32 %v2501, %v1009
      %vm2550 = vcmask 7168
      %2551 = vst.msk [vmem:[%s240] sm:$0xff] %vm2550, %v2502
      %2552 = vst.msk [vmem:[%s240 + $0x8] sm:$0xff] %vm2550, %v2503
      %2553 = vst.msk [vmem:[%s240 + $0x10] sm:$0xff] %vm2550, %v2504
      %2554 = vst.msk [vmem:[%s240 + $0x18] sm:$0xff] %vm2550, %v2505
      %2555 = vst.msk [vmem:[%s240 + $0x20] sm:$0xff] %vm2550, %v2506
      %2556 = vst.msk [vmem:[%s240 + $0x28] sm:$0xff] %vm2550, %v2507
      %2557 = vst.msk [vmem:[%s240 + $0x30] sm:$0xff] %vm2550, %v2508
      %2558 = vst.msk [vmem:[%s240 + $0x38] sm:$0xff] %vm2550, %v2509
      %2559 = vst.msk [vmem:[%s240 + $0x40] sm:$0xff] %vm2550, %v2510
      %2560 = vst.msk [vmem:[%s240 + $0x48] sm:$0xff] %vm2550, %v2511
      %2561 = vst.msk [vmem:[%s240 + $0x50] sm:$0xff] %vm2550, %v2512
      %2562 = vst.msk [vmem:[%s240 + $0x58] sm:$0xff] %vm2550, %v2513
      %2563 = vst.msk [vmem:[%s240 + $0x60] sm:$0xff] %vm2550, %v2514
      %2564 = vst.msk [vmem:[%s240 + $0x68] sm:$0xff] %vm2550, %v2515
      %2565 = vst.msk [vmem:[%s240 + $0x70] sm:$0xff] %vm2550, %v2516
      %2566 = vst.msk [vmem:[%s240 + $0x78] sm:$0xff] %vm2550, %v2517
      %2567 = vst.msk [vmem:[%s240 + $0x80] sm:$0xff] %vm2550, %v2518
      %2568 = vst.msk [vmem:[%s240 + $0x88] sm:$0xff] %vm2550, %v2519
      %2569 = vst.msk [vmem:[%s240 + $0x90] sm:$0xff] %vm2550, %v2520
      %2570 = vst.msk [vmem:[%s240 + $0x98] sm:$0xff] %vm2550, %v2521
      %2571 = vst.msk [vmem:[%s240 + $0xa0] sm:$0xff] %vm2550, %v2522
      %2572 = vst.msk [vmem:[%s240 + $0xa8] sm:$0xff] %vm2550, %v2523
      %2573 = vst.msk [vmem:[%s240 + $0xb0] sm:$0xff] %vm2550, %v2524
      %2574 = vst.msk [vmem:[%s240 + $0xb8] sm:$0xff] %vm2550, %v2525
      %2575 = vst.msk [vmem:[%s240 + $0xc0] sm:$0xff] %vm2550, %v2526
      %2576 = vst.msk [vmem:[%s240 + $0xc8] sm:$0xff] %vm2550, %v2527
      %2577 = vst.msk [vmem:[%s240 + $0xd0] sm:$0xff] %vm2550, %v2528
      %2578 = vst.msk [vmem:[%s240 + $0xd8] sm:$0xff] %vm2550, %v2529
      %2579 = vst.msk [vmem:[%s240 + $0xe0] sm:$0xff] %vm2550, %v2530
      %2580 = vst.msk [vmem:[%s240 + $0xe8] sm:$0xff] %vm2550, %v2531
      %2581 = vst.msk [vmem:[%s240 + $0xf0] sm:$0xff] %vm2550, %v2532
      %2582 = vst.msk [vmem:[%s240 + $0xf8] sm:$0xff] %vm2550, %v2533
      %2583 = vst.msk [vmem:[%s240 + $0x100] sm:$0xff] %vm2550, %v2534
      %2584 = vst.msk [vmem:[%s240 + $0x108] sm:$0xff] %vm2550, %v2535
      %2585 = vst.msk [vmem:[%s240 + $0x110] sm:$0xff] %vm2550, %v2536
      %2586 = vst.msk [vmem:[%s240 + $0x118] sm:$0xff] %vm2550, %v2537
      %2587 = vst.msk [vmem:[%s240 + $0x120] sm:$0xff] %vm2550, %v2538
      %2588 = vst.msk [vmem:[%s240 + $0x128] sm:$0xff] %vm2550, %v2539
      %2589 = vst.msk [vmem:[%s240 + $0x130] sm:$0xff] %vm2550, %v2540
      %2590 = vst.msk [vmem:[%s240 + $0x138] sm:$0xff] %vm2550, %v2541
      %2591 = vst.msk [vmem:[%s240 + $0x140] sm:$0xff] %vm2550, %v2542
      %2592 = vst.msk [vmem:[%s240 + $0x148] sm:$0xff] %vm2550, %v2543
      %2593 = vst.msk [vmem:[%s240 + $0x150] sm:$0xff] %vm2550, %v2544
      %2594 = vst.msk [vmem:[%s240 + $0x158] sm:$0xff] %vm2550, %v2545
      %2595 = vst.msk [vmem:[%s240 + $0x160] sm:$0xff] %vm2550, %v2546
      %2596 = vst.msk [vmem:[%s240 + $0x168] sm:$0xff] %vm2550, %v2547
      %2597 = vst.msk [vmem:[%s240 + $0x170] sm:$0xff] %vm2550, %v2548
      %2598 = vst.msk [vmem:[%s240 + $0x178] sm:$0xff] %vm2550, %v2549
      %s2599 = smul.u32 48, %s16
      %p2600 = scmp.lt.s32.totalorder %s2599, 95
      %s2601 = scalar_select %p2600, %s2599, 95
      %s2602 = smul.addr %s2601, 2
      %s2603 = smul.addr %s2602, 8
      %s2604 = scalar_lea.vmem %s3, %s2603
      %s2605 = smul.u32 48, %s16
      %p2606 = scmp.lt.s32.totalorder %s2605, 95
      %s2607 = scalar_select %p2606, %s2605, 95
      %s2608 = smul.addr %s2607, 8
      %s2609 = scalar_lea.vmem %s4, %s2608
      // Predicated region
      $region33: #{vit_embeddings.1} parent=31 // pred_check
        %p2610 = pneg %p107
      $region34: #{vit_embeddings.1} parent=31 // pred_check_branch
        %2612 = sbr.rel (%p2610) target = $region36
      $region35: #{vit_embeddings.1} parent=31 // pred_region
        %s2613 = smul.u32 48, %s16
      $region36: #{vit_embeddings.1} parent=31 // pred_fallthru
        _
      // Predicated region
      $region37: #{vit_embeddings.1} parent=31 // pred_check
        %p2614 = pneg %p133
      $region38: #{vit_embeddings.1} parent=31 // pred_check_branch
        %2616 = sbr.rel (%p2614) target = $region40
      $region39: #{vit_embeddings.1} parent=31 // pred_region
        %s2617 = smul.u32 48, %s16
      $region40: #{vit_embeddings.1} parent=31 // pred_fallthru
        _
    $region32: #{vit_embeddings.1} parent=5 // pred_fallthru
      _
    %p2618 = scmp.le.s32.totalorder 2, %s11
    // Predicated region
    $region41: #{vit_embeddings.1} parent=5 // pred_check
      %p2619 = pneg %p2618
    $region42: #{vit_embeddings.1} parent=5 // pred_check_branch
      %2621 = sbr.rel (%p2619) target = $region44
    $region43: #{vit_embeddings.1} parent=5 // pred_region
      %s2622 = ssub.s32 %s11, 2
      // Predicated region
      $region45: #{vit_embeddings.1} parent=43 // pred_check
        %p2623 = pneg %p113
      $region46: #{vit_embeddings.1} parent=43 // pred_check_branch
        %2625 = sbr.rel (%p2623) target = $region48
      $region47: #{vit_embeddings.1} parent=43 // pred_region
        %s2626 = smul.u32 48, %s17
        %p2627 = scmp.lt.s32.totalorder %s2626, 95
        %s2628 = scalar_select %p2627, %s2626, 95
        %s2629 = smul.addr %s2628, 2
        %s2630 = smul.addr %s2629, 8
        %s2631 = scalar_lea.vmem %s3, %s2630
      $region48: #{vit_embeddings.1} parent=43 // pred_fallthru
        _
      // Predicated region
      $region49: #{vit_embeddings.1} parent=43 // pred_check
        %p2632 = pneg %p139
      $region50: #{vit_embeddings.1} parent=43 // pred_check_branch
        %2634 = sbr.rel (%p2632) target = $region52
      $region51: #{vit_embeddings.1} parent=43 // pred_region
        %s2635 = smul.u32 48, %s17
        %p2636 = scmp.lt.s32.totalorder %s2635, 95
        %s2637 = scalar_select %p2636, %s2635, 95
        %s2638 = smul.addr %s2637, 8
        %s2639 = scalar_lea.vmem %s4, %s2638
      $region52: #{vit_embeddings.1} parent=43 // pred_fallthru
        _
    $region44: #{vit_embeddings.1} parent=5 // pred_fallthru
      _
  $region6: #{vit_embeddings.1} parent=0 // loop_footer
    %s15 = sadd.s32 1, %s11
  $region7: #{vit_embeddings.1} parent=0 // loop_footer_branch
    %10 = sbr.rel target = $region3
  $region8: #{vit_embeddings.1} parent=0 // loop_exit
    _

</llo_original>
